<compile_context>
chip_gen: v7x
topology: tpu7x:2x2x1
jax: 0.10.0
libtpu: 0.0.40
codegen_flags: <defaults>
</compile_context>

<pallas_src>
import functools

import jax
import jax.numpy as jnp
from jax import lax
from jax.experimental import pallas as pl
from jax.experimental.pallas import tpu as pltpu


# ------------------------------------------------------------------ helpers --

def _softplus(x):
    # numerically stable softplus: max(x, 0) + log1p(exp(-|x|))
    return jnp.maximum(x, 0.0) + jnp.log1p(jnp.exp(-jnp.abs(x)))


def _partial_slab(vals):
    """Pack a few scalar partial sums into a lane-dense (8, 128) f32 slab."""
    lane = lax.broadcasted_iota(jnp.int32, (8, 128), 1)
    sub = lax.broadcasted_iota(jnp.int32, (8, 128), 0)
    slab = jnp.zeros((8, 128), jnp.float32)
    for i, v in enumerate(vals):
        slab = slab + jnp.where((sub == 0) & (lane == i), v, 0.0)
    return slab


# ------------------------------------------------------------------ kernels --

def _stnet_kernel(x_ref, eps_ref, wmv_ref, bmv_ref, wdec_ref, bdec_ref,
                  w1x_ref, w1z_ref, b1_ref, w2_ref, wt_ref, bt_ref,
                  xrec_ref, xpred_ref, part_ref, *, z_dim, in_dim):
    """Fused VarUnit + decoder + out-proj + time-proj + MLBO critic per batch."""
    x = x_ref[0]                                             # [L, D]

    # --- VarUnit: one fused [D, 2Z] matmul for (mu | softplus-pre) ---
    mv = jnp.dot(x, wmv_ref[...], preferred_element_type=jnp.float32) + bmv_ref[...]
    mu = mv[:, :z_dim]
    scale = _softplus(mv[:, z_dim:]) + 1e-6                  # Normal(loc, scale)

    # --- reparameterisation with host-streamed noise ---
    # TODO(synk): on-chip PRNG (pltpu.prng_seed / stateful_normal) removed --
    # not lowerable in interpret mode; eps comes from HBM instead.
    z = mu + scale * eps_ref[0]                              # [L, Z]

    # --- fused decoder: one [Z, D+O] matmul -> (x_rec | feat) ---
    dec = jnp.dot(z, wdec_ref[...], preferred_element_type=jnp.float32) + bdec_ref[...]
    x_rec = dec[:, :in_dim]                                  # [L, D]
    feat = dec[:, in_dim:]                                   # [L, O]
    xrec_ref[0] = x_rec.astype(xrec_ref.dtype)

    # --- time projection: contract the L axis in-kernel (no host transpose) ---
    pred = lax.dot_general(wt_ref[...], feat,
                           dimension_numbers=(((0,), (0,)), ((), ())),
                           preferred_element_type=jnp.float32)  # [P, O]
    pred = pred + bt_ref[...]
    xpred_ref[0] = pred.astype(xpred_ref.dtype)

    # --- MLBO critic(x, z): hidden layer on MXU, N=1 projection on VPU ---
    h = (jnp.dot(x, w1x_ref[...], preferred_element_type=jnp.float32)
         + jnp.dot(z, w1z_ref[...], preferred_element_type=jnp.float32)
         + b1_ref[...])
    h = jnp.maximum(h, 0.0)
    c_sum = jnp.sum(h * w2_ref[...])          # sum_i sum_j h*w2 ; +b2 host-side

    # --- simplified ELBO KL partial sum (mean & -0.5 applied host-side) ---
    var = scale * scale
    kl_sum = jnp.sum(mu * mu + var - jnp.log(var) - 1.0)

    part_ref[0] = _partial_slab([kl_sum, c_sum])


def _recerr_kernel(xs_ref, xt_ref, x_ref, part_ref):
    d = xs_ref[0] + xt_ref[0] - x_ref[0]
    part_ref[0] = _partial_slab([jnp.sum(d * d)])


def _mubo_kernel(idx_ref, x_ref, xg_ref, eps_s_ref, eps_t_ref, eps_tg_ref,
                 wmvs_ref, bmvs_ref, wmvt_ref, bmvt_ref,
                 w1s_ref, w1t_ref, b1_ref, w2_ref,
                 part_ref, *, zs_dim, zt_dim):
    """CalculateMubo per batch block: resample zs/zt, gather shuffled zt."""
    del idx_ref  # permutation is consumed by the BlockSpec index_maps only

    def reparam(xv, eps, wmv_ref, bmv_ref, zdim):
        mv = jnp.dot(xv, wmv_ref[...], preferred_element_type=jnp.float32) + bmv_ref[...]
        mu = mv[:, :zdim]
        scale = _softplus(mv[:, zdim:]) + 1e-6
        return mu + scale * eps

    x = x_ref[0]                               # x[b]
    xg = xg_ref[0]                             # x[idx[b]] (gathered via prefetch)
    zs = reparam(x, eps_s_ref[0], wmvs_ref, bmvs_ref, zs_dim)
    zt = reparam(x, eps_t_ref[0], wmvt_ref, bmvt_ref, zt_dim)
    # same (x, eps) pair as batch idx[b]'s own zt  =>  zt_sh == zt[idx[b]]
    zt_sh = reparam(xg, eps_tg_ref[0], wmvt_ref, bmvt_ref, zt_dim)

    # critic_st: zs-projection hoisted (computed once for f_st and f_s_t)
    hs = jnp.dot(zs, w1s_ref[...], preferred_element_type=jnp.float32) + b1_ref[...]
    h_st = jnp.maximum(hs + jnp.dot(zt, w1t_ref[...],
                                    preferred_element_type=jnp.float32), 0.0)
    h_s_t = jnp.maximum(hs + jnp.dot(zt_sh, w1t_ref[...],
                                     preferred_element_type=jnp.float32), 0.0)
    # final [H,1] projection on the VPU; the +b2 bias cancels in f_st - f_s_t
    mubo_rows = jnp.sum((h_st - h_s_t) * w2_ref[...], axis=-1, keepdims=True)
    masked = jnp.where(mubo_rows < 0.0, mubo_rows, 0.0)
    part_ref[0] = _partial_slab([jnp.sum(mubo_rows), jnp.sum(masked * masked)])


# ----------------------------------------------------------------- wrappers --

def stnet_forward(x_his, p, eps):
    """Simplified SNet/TNet forward, fully fused per batch block.

    Returns (x_pred, x_rec, elbo, mlbo)."""
    # TODO(synk): original LaST SNet/TNet (Fourier seasonality, multi-scale
    # trend conv encoders/decoders, period_sim/trend_sim) not provided;
    # simplified to VarUnit + linear decoder/predictor with same interface.
    B, L, D = x_his.shape
    Z = p["var"]["w_mu"].shape[1]
    O = p["w_out"].shape[1]
    P = p["w_time"].shape[1]
    cp = p["critic"]
    H = cp["w1a"].shape[1]

    w_muvar = jnp.concatenate([p["var"]["w_mu"], p["var"]["w_var"]], axis=1)
    b_muvar = jnp.concatenate([p["var"]["b_mu"], p["var"]["b_var"]]).reshape(1, 2 * Z)
    w_dec = jnp.concatenate([p["w_rec"], p["w_out"]], axis=1)
    b_dec = jnp.concatenate([p["b_rec"], p["b_out"]]).reshape(1, D + O)

    grid_spec = pltpu.PrefetchScalarGridSpec(
        num_scalar_prefetch=0,
        grid=(B,),
        in_specs=[
            pl.BlockSpec((1, L, D), lambda b: (b, 0, 0)),
            pl.BlockSpec((1, L, Z), lambda b: (b, 0, 0)),
            pl.BlockSpec((D, 2 * Z), lambda b: (0, 0)),
            pl.BlockSpec((1, 2 * Z), lambda b: (0, 0)),
            pl.BlockSpec((Z, D + O), lambda b: (0, 0)),
            pl.BlockSpec((1, D + O), lambda b: (0, 0)),
            pl.BlockSpec((D, H), lambda b: (0, 0)),
            pl.BlockSpec((Z, H), lambda b: (0, 0)),
            pl.BlockSpec((1, H), lambda b: (0, 0)),
            pl.BlockSpec((1, H), lambda b: (0, 0)),
            pl.BlockSpec((L, P), lambda b: (0, 0)),
            pl.BlockSpec((P, 1), lambda b: (0, 0)),
        ],
        out_specs=(
            pl.BlockSpec((1, L, D), lambda b: (b, 0, 0)),
            pl.BlockSpec((1, P, O), lambda b: (b, 0, 0)),
            pl.BlockSpec((1, 8, 128), lambda b: (b, 0, 0)),
        ),
    )
    x_rec, x_pred, partials = pl.pallas_call(
        functools.partial(_stnet_kernel, z_dim=Z, in_dim=D),
        grid_spec=grid_spec,
        out_shape=(
            jax.ShapeDtypeStruct((B, L, D), jnp.float32),
            jax.ShapeDtypeStruct((B, P, O), jnp.float32),
            jax.ShapeDtypeStruct((B, 8, 128), jnp.float32),
        ),
        compiler_params=pltpu.CompilerParams(dimension_semantics=("parallel",)),
    )(x_his, eps, w_muvar, b_muvar, w_dec, b_dec,
      cp["w1a"], cp["w1b"], cp["b1"].reshape(1, H), cp["w2"].reshape(1, H),
      p["w_time"], p["b_time"].reshape(P, 1))

    M = B * L
    kl_total = partials[:, 0, 0].sum()
    c_total = partials[:, 0, 1].sum()
    elbo = -0.5 * kl_total / (M * Z)          # simplified ELBO (KL) term
    mlbo = c_total / M + cp["b2"][0]          # mean critic score (bias host-side)
    return x_pred, x_rec, elbo, mlbo


def rec_err_scalar(xs_rec, xt_rec, x_his):
    B, L, D = x_his.shape
    grid_spec = pltpu.PrefetchScalarGridSpec(
        num_scalar_prefetch=0,
        grid=(B,),
        in_specs=[pl.BlockSpec((1, L, D), lambda b: (b, 0, 0))] * 3,
        out_specs=pl.BlockSpec((1, 8, 128), lambda b: (b, 0, 0)),
    )
    partials = pl.pallas_call(
        _recerr_kernel,
        grid_spec=grid_spec,
        out_shape=jax.ShapeDtypeStruct((B, 8, 128), jnp.float32),
        compiler_params=pltpu.CompilerParams(dimension_semantics=("parallel",)),
    )(xs_rec, xt_rec, x_his)
    return partials[:, 0, 0].sum() / (B * L * D)


def calculate_mubo(x_his, var_s, var_t, critic_st, idx, eps_s, eps_t):
    """CalculateMubo: resampled zs/zt, batch-shuffled zt via scalar-prefetch
    gather of (x, eps_t), critic / masking / reg fused per batch block."""
    B, L, D = x_his.shape
    Zs = var_s["w_mu"].shape[1]
    Zt = var_t["w_mu"].shape[1]
    H = critic_st["w1a"].shape[1]

    wmv_s = jnp.concatenate([var_s["w_mu"], var_s["w_var"]], axis=1)
    bmv_s = jnp.concatenate([var_s["b_mu"], var_s["b_var"]]).reshape(1, 2 * Zs)
    wmv_t = jnp.concatenate([var_t["w_mu"], var_t["w_var"]], axis=1)
    bmv_t = jnp.concatenate([var_t["b_mu"], var_t["b_var"]]).reshape(1, 2 * Zt)

    grid_spec = pltpu.PrefetchScalarGridSpec(
        num_scalar_prefetch=1,
        grid=(B,),
        in_specs=[
            pl.BlockSpec((1, L, D), lambda b, idx: (b, 0, 0)),
            pl.BlockSpec((1, L, D), lambda b, idx: (idx[b], 0, 0)),
            pl.BlockSpec((1, L, Zs), lambda b, idx: (b, 0, 0)),
            pl.BlockSpec((1, L, Zt), lambda b, idx: (b, 0, 0)),
            pl.BlockSpec((1, L, Zt), lambda b, idx: (idx[b], 0, 0)),
            pl.BlockSpec((D, 2 * Zs), lambda b, idx: (0, 0)),
            pl.BlockSpec((1, 2 * Zs), lambda b, idx: (0, 0)),
            pl.BlockSpec((D, 2 * Zt), lambda b, idx: (0, 0)),
            pl.BlockSpec((1, 2 * Zt), lambda b, idx: (0, 0)),
            pl.BlockSpec((Zs, H), lambda b, idx: (0, 0)),
            pl.BlockSpec((Zt, H), lambda b, idx: (0, 0)),
            pl.BlockSpec((1, H), lambda b, idx: (0, 0)),
            pl.BlockSpec((1, H), lambda b, idx: (0, 0)),
        ],
        out_specs=pl.BlockSpec((1, 8, 128), lambda b, idx: (b, 0, 0)),
    )
    partials = pl.pallas_call(
        functools.partial(_mubo_kernel, zs_dim=Zs, zt_dim=Zt),
        grid_spec=grid_spec,
        out_shape=jax.ShapeDtypeStruct((B, 8, 128), jnp.float32),
        compiler_params=pltpu.CompilerParams(dimension_semantics=("parallel",)),
    )(idx, x_his, x_his, eps_s, eps_t, eps_t,
      wmv_s, bmv_s, wmv_t, bmv_t,
      critic_st["w1a"], critic_st["w1b"], critic_st["b1"].reshape(1, H),
      critic_st["w2"].reshape(1, H))

    n = B * L
    return partials[:, 0, 0].sum() / n + partials[:, 0, 1].sum() / n


def last_block_forward(x_his, params, key):
    B, L, _ = x_his.shape
    Zs = params["snet"]["var"]["w_mu"].shape[1]
    Zt = params["tnet"]["var"]["w_mu"].shape[1]

    k_s, k_t, k_ms, k_mt, k_perm = jax.random.split(key, 5)
    eps_s = jax.random.normal(k_s, (B, L, Zs), jnp.float32)
    eps_t = jax.random.normal(k_t, (B, L, Zt), jnp.float32)

    x_s, xs_rec, elbo_s, mlbo_s = stnet_forward(x_his, params["snet"], eps_s)
    x_t, xt_rec, elbo_t, mlbo_t = stnet_forward(x_his, params["tnet"], eps_t)

    rec_err = rec_err_scalar(xs_rec, xt_rec, x_his)
    elbo = elbo_t + elbo_s - rec_err
    mlbo = mlbo_t + mlbo_s

    idx = jax.random.permutation(k_perm, B).astype(jnp.int32)
    eps_ms = jax.random.normal(k_ms, (B, L, Zs), jnp.float32)
    eps_mt = jax.random.normal(k_mt, (B, L, Zt), jnp.float32)
    mubo = calculate_mubo(x_his, params["snet"]["var"], params["tnet"]["var"],
                          params["mubo_critic"], idx, eps_ms, eps_mt)
    return x_s, x_t, elbo, mlbo, mubo


# -------------------------------------------------------------- param init --

def _init_linear(key, fan_in, fan_out):
    kw, kb = jax.random.split(key)
    bound = 1.0 / (fan_in ** 0.5)
    w = jax.random.uniform(kw, (fan_in, fan_out), jnp.float32, -bound, bound)
    b = jax.random.uniform(kb, (fan_out,), jnp.float32, -bound, bound)
    return w, b


def _init_critic(key, da, db):
    # TODO(synk): CriticFunc internals not given; 2-layer MLP on cat(a, b).
    cat = da + db
    hid = max(cat // 4, 1)
    k1, k2 = jax.random.split(key)
    w1, b1 = _init_linear(k1, cat, hid)
    w2, b2 = _init_linear(k2, hid, 1)
    return {"w1a": w1[:da], "w1b": w1[da:], "b1": b1, "w2": w2, "b2": b2}


def _init_stnet(key, in_dim, out_dim, seq_len, pred_len, z_dim):
    ks = jax.random.split(key, 6)
    w_mu, b_mu = _init_linear(ks[0], in_dim, z_dim)
    w_var, b_var = _init_linear(ks[1], in_dim, z_dim)
    w_rec, b_rec = _init_linear(ks[2], z_dim, in_dim)
    w_out, b_out = _init_linear(ks[3], z_dim, out_dim)
    w_time, b_time = _init_linear(ks[4], seq_len, pred_len)
    return {
        "var": {"w_mu": w_mu, "b_mu": b_mu, "w_var": w_var, "b_var": b_var},
        "w_rec": w_rec, "b_rec": b_rec,
        "w_out": w_out, "b_out": b_out,
        "w_time": w_time, "b_time": b_time,
        "critic": _init_critic(ks[5], in_dim, z_dim),
    }


def init_last_block(key, in_dim, out_dim, seq_len, pred_len, inner_s, inner_t):
    k1, k2, k3 = jax.random.split(key, 3)
    return {
        "snet": _init_stnet(k1, in_dim, out_dim, seq_len, pred_len, inner_s),
        "tnet": _init_stnet(k2, in_dim, out_dim, seq_len, pred_len, inner_t),
        "mubo_critic": _init_critic(k3, inner_s, inner_t),
    }


# --------------------------------------------------------------------- main --

if __name__ == "__main__":
    B, L, P = 2, 8, 8
    in_dim, out_dim = 4, 4
    inner_s, inner_t = 16, 16

    root = jax.random.PRNGKey(0)
    k_param, k_data, k_fwd = jax.random.split(root, 3)

    params = init_last_block(k_param, in_dim, out_dim, L, P, inner_s, inner_t)
    x_his = jax.random.normal(k_data, (B, L, in_dim), jnp.float32)

    x_s, x_t, elbo, mlbo, mubo = last_block_forward(x_his, params, k_fwd)
    jax.block_until_ready((x_s, x_t, elbo, mlbo, mubo))

    assert x_s.shape == (B, P, out_dim)
    assert x_t.shape == (B, P, out_dim)
    assert elbo.shape == () and mlbo.shape == () and mubo.shape == ()
    assert bool(jnp.isfinite(jnp.stack([elbo, mlbo, mubo])).all())
    print("KERNEL_OK")
</pallas_src>

<mosaic_0001>
module attributes {stable_mosaic.version = 11 : i64} {
  func.func @_stnet_kernel(%arg0: i32, %arg1: memref<1x8x4xf32, #tpu.memory_space<vmem>>, %arg2: memref<1x8x16xf32, #tpu.memory_space<vmem>>, %arg3: memref<4x32xf32, #tpu.memory_space<vmem>>, %arg4: memref<1x32xf32, #tpu.memory_space<vmem>>, %arg5: memref<16x8xf32, #tpu.memory_space<vmem>>, %arg6: memref<1x8xf32, #tpu.memory_space<vmem>>, %arg7: memref<4x5xf32, #tpu.memory_space<vmem>>, %arg8: memref<16x5xf32, #tpu.memory_space<vmem>>, %arg9: memref<1x5xf32, #tpu.memory_space<vmem>>, %arg10: memref<1x5xf32, #tpu.memory_space<vmem>>, %arg11: memref<8x8xf32, #tpu.memory_space<vmem>>, %arg12: memref<8x1xf32, #tpu.memory_space<vmem>>, %arg13: memref<1x8x4xf32, #tpu.memory_space<vmem>>, %arg14: memref<1x8x4xf32, #tpu.memory_space<vmem>>, %arg15: memref<1x8x128xf32, #tpu.memory_space<vmem>>) attributes {dimension_semantics = [#tpu.dimension_semantics<parallel>], iteration_bounds = array<i64: 2>, scalar_prefetch = 0 : i64, scratch_operands = 0 : i64, tpu.core_type = #tpu.core_type<tc>, window_params = [{transform_indices = @transform_0, window_bounds = array<i64: 1, 8, 4>}, {transform_indices = @transform_1, window_bounds = array<i64: 1, 8, 16>}, {pipeline_mode = #tpu.pipeline_mode<synchronous>, transform_indices = @transform_2, window_bounds = array<i64: 4, 32>}, {pipeline_mode = #tpu.pipeline_mode<synchronous>, transform_indices = @transform_3, window_bounds = array<i64: 1, 32>}, {pipeline_mode = #tpu.pipeline_mode<synchronous>, transform_indices = @transform_4, window_bounds = array<i64: 16, 8>}, {pipeline_mode = #tpu.pipeline_mode<synchronous>, transform_indices = @transform_5, window_bounds = array<i64: 1, 8>}, {pipeline_mode = #tpu.pipeline_mode<synchronous>, transform_indices = @transform_6, window_bounds = array<i64: 4, 5>}, {pipeline_mode = #tpu.pipeline_mode<synchronous>, transform_indices = @transform_7, window_bounds = array<i64: 16, 5>}, {pipeline_mode = #tpu.pipeline_mode<synchronous>, transform_indices = @transform_8, window_bounds = array<i64: 1, 5>}, {pipeline_mode = #tpu.pipeline_mode<synchronous>, transform_indices = @transform_9, window_bounds = array<i64: 1, 5>}, {pipeline_mode = #tpu.pipeline_mode<synchronous>, transform_indices = @transform_10, window_bounds = array<i64: 8, 8>}, {pipeline_mode = #tpu.pipeline_mode<synchronous>, transform_indices = @transform_11, window_bounds = array<i64: 8, 1>}, {transform_indices = @transform_12, window_bounds = array<i64: 1, 8, 4>}, {transform_indices = @transform_13, window_bounds = array<i64: 1, 8, 4>}, {transform_indices = @transform_14, window_bounds = array<i64: 1, 8, 128>}]} {
    %c0 = arith.constant 0 : index
    %c0_0 = arith.constant 0 : index
    %c0_1 = arith.constant 0 : index
    %0 = vector.load %arg1[%c0, %c0_0, %c0_1] : memref<1x8x4xf32, #tpu.memory_space<vmem>>, vector<1x8x4xf32>
    %1 = vector.shape_cast %0 : vector<1x8x4xf32> to vector<8x4xf32>
    %c0_2 = arith.constant 0 : index
    %c0_3 = arith.constant 0 : index
    %2 = vector.load %arg3[%c0_2, %c0_3] : memref<4x32xf32, #tpu.memory_space<vmem>>, vector<4x32xf32>
    %cst = arith.constant dense<0.000000e+00> : vector<8x32xf32>
    %3 = tpu.matmul %1, %2, %cst {dimension_numbers = #tpu.dot_dimension_numbers<[1], [0], [0], [1], [0, 0, 1, 1], [], []>} : vector<8x4xf32>, vector<4x32xf32>, vector<8x32xf32> -> vector<8x32xf32>
    %c0_4 = arith.constant 0 : index
    %c0_5 = arith.constant 0 : index
    %4 = vector.load %arg4[%c0_4, %c0_5] : memref<1x32xf32, #tpu.memory_space<vmem>>, vector<1x32xf32>
    %5 = vector.broadcast %4 : vector<1x32xf32> to vector<8x32xf32>
    %6 = arith.addf %3, %5 : vector<8x32xf32>
    %7 = vector.extract_strided_slice %6 {offsets = [0, 0], sizes = [8, 16], strides = [1, 1]} : vector<8x32xf32> to vector<8x16xf32>
    %8 = vector.extract_strided_slice %6 {offsets = [0, 16], sizes = [8, 16], strides = [1, 1]} : vector<8x32xf32> to vector<8x16xf32>
    %cst_6 = arith.constant 0.000000e+00 : f32
    %9 = vector.broadcast %cst_6 : f32 to vector<8x16xf32>
    %10 = arith.maximumf %8, %9 : vector<8x16xf32>
    %11 = math.absf %8 : vector<8x16xf32>
    %cst_7 = arith.constant 0.000000e+00 : f32
    %12 = vector.broadcast %cst_7 : f32 to vector<8x16xf32>
    %13 = arith.subf %12, %11 : vector<8x16xf32>
    %14 = math.exp %13 : vector<8x16xf32>
    %15 = math.log1p %14 : vector<8x16xf32>
    %16 = arith.addf %10, %15 : vector<8x16xf32>
    %cst_8 = arith.constant 9.99999997E-7 : f32
    %17 = vector.broadcast %cst_8 : f32 to vector<8x16xf32>
    %18 = arith.addf %16, %17 : vector<8x16xf32>
    %c0_9 = arith.constant 0 : index
    %c0_10 = arith.constant 0 : index
    %c0_11 = arith.constant 0 : index
    %19 = vector.load %arg2[%c0_9, %c0_10, %c0_11] : memref<1x8x16xf32, #tpu.memory_space<vmem>>, vector<1x8x16xf32>
    %20 = vector.shape_cast %19 : vector<1x8x16xf32> to vector<8x16xf32>
    %21 = arith.mulf %18, %20 : vector<8x16xf32>
    %22 = arith.addf %7, %21 : vector<8x16xf32>
    %c0_12 = arith.constant 0 : index
    %c0_13 = arith.constant 0 : index
    %23 = vector.load %arg5[%c0_12, %c0_13] : memref<16x8xf32, #tpu.memory_space<vmem>>, vector<16x8xf32>
    %cst_14 = arith.constant dense<0.000000e+00> : vector<8x8xf32>
    %24 = tpu.matmul %22, %23, %cst_14 {dimension_numbers = #tpu.dot_dimension_numbers<[1], [0], [0], [1], [0, 0, 1, 1], [], []>} : vector<8x16xf32>, vector<16x8xf32>, vector<8x8xf32> -> vector<8x8xf32>
    %c0_15 = arith.constant 0 : index
    %c0_16 = arith.constant 0 : index
    %25 = vector.load %arg6[%c0_15, %c0_16] : memref<1x8xf32, #tpu.memory_space<vmem>>, vector<1x8xf32>
    %26 = vector.broadcast %25 : vector<1x8xf32> to vector<8x8xf32>
    %27 = arith.addf %24, %26 : vector<8x8xf32>
    %28 = vector.extract_strided_slice %27 {offsets = [0, 0], sizes = [8, 4], strides = [1, 1]} : vector<8x8xf32> to vector<8x4xf32>
    %29 = vector.extract_strided_slice %27 {offsets = [0, 4], sizes = [8, 4], strides = [1, 1]} : vector<8x8xf32> to vector<8x4xf32>
    %c0_17 = arith.constant 0 : index
    %c0_18 = arith.constant 0 : index
    %c0_19 = arith.constant 0 : index
    %30 = vector.load %arg13[%c0_17, %c0_18, %c0_19] : memref<1x8x4xf32, #tpu.memory_space<vmem>>, vector<1x8x4xf32>
    %31 = vector.shape_cast %30 : vector<1x8x4xf32> to vector<8x4xf32>
    %32 = vector.shape_cast %28 : vector<8x4xf32> to vector<1x8x4xf32>
    tpu.vector_store %arg13[%c0_17, %c0_18, %c0_19], %32 {strides = array<i32>} : memref<1x8x4xf32, #tpu.memory_space<vmem>>, vector<1x8x4xf32>,
    %c0_20 = arith.constant 0 : index
    %c0_21 = arith.constant 0 : index
    %33 = vector.load %arg11[%c0_20, %c0_21] : memref<8x8xf32, #tpu.memory_space<vmem>>, vector<8x8xf32>
    %cst_22 = arith.constant dense<0.000000e+00> : vector<8x4xf32>
    %34 = tpu.matmul %33, %29, %cst_22 {dimension_numbers = #tpu.dot_dimension_numbers<[0], [0], [1], [1], [0, 1, 1, 1], [], []>} : vector<8x8xf32>, vector<8x4xf32>, vector<8x4xf32> -> vector<8x4xf32>
    %c0_23 = arith.constant 0 : index
    %c0_24 = arith.constant 0 : index
    %35 = vector.load %arg12[%c0_23, %c0_24] : memref<8x1xf32, #tpu.memory_space<vmem>>, vector<8x1xf32>
    %36 = vector.broadcast %35 : vector<8x1xf32> to vector<8x4xf32>
    %37 = arith.addf %34, %36 : vector<8x4xf32>
    %c0_25 = arith.constant 0 : index
    %c0_26 = arith.constant 0 : index
    %c0_27 = arith.constant 0 : index
    %38 = vector.load %arg14[%c0_25, %c0_26, %c0_27] : memref<1x8x4xf32, #tpu.memory_space<vmem>>, vector<1x8x4xf32>
    %39 = vector.shape_cast %38 : vector<1x8x4xf32> to vector<8x4xf32>
    %40 = vector.shape_cast %37 : vector<8x4xf32> to vector<1x8x4xf32>
    tpu.vector_store %arg14[%c0_25, %c0_26, %c0_27], %40 {strides = array<i32>} : memref<1x8x4xf32, #tpu.memory_space<vmem>>, vector<1x8x4xf32>,
    %c0_28 = arith.constant 0 : index
    %c0_29 = arith.constant 0 : index
    %41 = vector.load %arg7[%c0_28, %c0_29] : memref<4x5xf32, #tpu.memory_space<vmem>>, vector<4x5xf32>
    %cst_30 = arith.constant dense<0.000000e+00> : vector<8x5xf32>
    %42 = tpu.matmul %1, %41, %cst_30 {dimension_numbers = #tpu.dot_dimension_numbers<[1], [0], [0], [1], [0, 0, 1, 1], [], []>} : vector<8x4xf32>, vector<4x5xf32>, vector<8x5xf32> -> vector<8x5xf32>
    %c0_31 = arith.constant 0 : index
    %c0_32 = arith.constant 0 : index
    %43 = vector.load %arg8[%c0_31, %c0_32] : memref<16x5xf32, #tpu.memory_space<vmem>>, vector<16x5xf32>
    %cst_33 = arith.constant dense<0.000000e+00> : vector<8x5xf32>
    %44 = tpu.matmul %22, %43, %cst_33 {dimension_numbers = #tpu.dot_dimension_numbers<[1], [0], [0], [1], [0, 0, 1, 1], [], []>} : vector<8x16xf32>, vector<16x5xf32>, vector<8x5xf32> -> vector<8x5xf32>
    %45 = arith.addf %42, %44 : vector<8x5xf32>
    %c0_34 = arith.constant 0 : index
    %c0_35 = arith.constant 0 : index
    %46 = vector.load %arg9[%c0_34, %c0_35] : memref<1x5xf32, #tpu.memory_space<vmem>>, vector<1x5xf32>
    %47 = vector.broadcast %46 : vector<1x5xf32> to vector<8x5xf32>
    %48 = arith.addf %45, %47 : vector<8x5xf32>
    %cst_36 = arith.constant 0.000000e+00 : f32
    %49 = vector.broadcast %cst_36 : f32 to vector<8x5xf32>
    %50 = arith.maximumf %48, %49 : vector<8x5xf32>
    %c0_37 = arith.constant 0 : index
    %c0_38 = arith.constant 0 : index
    %51 = vector.load %arg10[%c0_37, %c0_38] : memref<1x5xf32, #tpu.memory_space<vmem>>, vector<1x5xf32>
    %52 = vector.broadcast %51 : vector<1x5xf32> to vector<8x5xf32>
    %53 = arith.mulf %50, %52 : vector<8x5xf32>
    %54 = vector.shape_cast %53 : vector<8x5xf32> to vector<1x8x5xf32>
    %cst_39 = arith.constant dense<0.000000e+00> : vector<1xf32>
    %55 = vector.multi_reduction <add>, %54, %cst_39 [1, 2] : vector<1x8x5xf32> to vector<1xf32>
    %56 = vector.shape_cast %55 : vector<1xf32> to vector<1x1x1xf32>
    %57 = vector.extract %56[0, 0, 0] : f32 from vector<1x1x1xf32>
    %58 = arith.mulf %18, %18 : vector<8x16xf32>
    %59 = arith.mulf %7, %7 : vector<8x16xf32>
    %60 = arith.addf %59, %58 : vector<8x16xf32>
    %61 = math.log %58 : vector<8x16xf32>
    %62 = arith.subf %60, %61 : vector<8x16xf32>
    %cst_40 = arith.constant 1.000000e+00 : f32
    %63 = vector.broadcast %cst_40 : f32 to vector<8x16xf32>
    %64 = arith.subf %62, %63 : vector<8x16xf32>
    %65 = vector.shape_cast %64 : vector<8x16xf32> to vector<1x8x16xf32>
    %cst_41 = arith.constant dense<0.000000e+00> : vector<1xf32>
    %66 = vector.multi_reduction <add>, %65, %cst_41 [1, 2] : vector<1x8x16xf32> to vector<1xf32>
    %67 = vector.shape_cast %66 : vector<1xf32> to vector<1x1x1xf32>
    %68 = vector.extract %67[0, 0, 0] : f32 from vector<1x1x1xf32>
    %69 = tpu.iota {dimensions = array<i32: 1>} : vector<8x128xi32>
    %70 = tpu.iota {dimensions = array<i32: 0>} : vector<8x128xi32>
    %cst_42 = arith.constant 0.000000e+00 : f32
    %71 = vector.broadcast %cst_42 : f32 to vector<8x128xf32>
    %c0_i32 = arith.constant 0 : i32
    %72 = vector.broadcast %c0_i32 : i32 to vector<8x128xi32>
    %73 = arith.cmpi eq, %70, %72 : vector<8x128xi32>
    %c0_i32_43 = arith.constant 0 : i32
    %74 = vector.broadcast %c0_i32_43 : i32 to vector<8x128xi32>
    %75 = arith.cmpi eq, %69, %74 : vector<8x128xi32>
    %76 = arith.andi %73, %75 : vector<8x128xi1>
    %cst_44 = arith.constant 0.000000e+00 : f32
    %77 = vector.broadcast %68 : f32 to vector<8x128xf32>
    %78 = vector.broadcast %cst_44 : f32 to vector<8x128xf32>
    %79 = arith.select %76, %77, %78 : vector<8x128xi1>, vector<8x128xf32>
    %80 = arith.addf %71, %79 : vector<8x128xf32>
    %c0_i32_45 = arith.constant 0 : i32
    %81 = vector.broadcast %c0_i32_45 : i32 to vector<8x128xi32>
    %82 = arith.cmpi eq, %70, %81 : vector<8x128xi32>
    %c1_i32 = arith.constant 1 : i32
    %83 = vector.broadcast %c1_i32 : i32 to vector<8x128xi32>
    %84 = arith.cmpi eq, %69, %83 : vector<8x128xi32>
    %85 = arith.andi %82, %84 : vector<8x128xi1>
    %cst_46 = arith.constant 0.000000e+00 : f32
    %86 = vector.broadcast %57 : f32 to vector<8x128xf32>
    %87 = vector.broadcast %cst_46 : f32 to vector<8x128xf32>
    %88 = arith.select %85, %86, %87 : vector<8x128xi1>, vector<8x128xf32>
    %89 = arith.addf %80, %88 : vector<8x128xf32>
    %c0_47 = arith.constant 0 : index
    %c0_48 = arith.constant 0 : index
    %c0_49 = arith.constant 0 : index
    %90 = vector.load %arg15[%c0_47, %c0_48, %c0_49] : memref<1x8x128xf32, #tpu.memory_space<vmem>>, vector<1x8x128xf32>
    %91 = vector.shape_cast %90 : vector<1x8x128xf32> to vector<8x128xf32>
    %92 = vector.shape_cast %89 : vector<8x128xf32> to vector<1x8x128xf32>
    tpu.vector_store %arg15[%c0_47, %c0_48, %c0_49], %92 {strides = array<i32>} : memref<1x8x128xf32, #tpu.memory_space<vmem>>, vector<1x8x128xf32>,
    return
  }
  func.func @transform_0(%arg0: i32) -> (i32, i32, i32) {
    %c0_i32 = arith.constant 0 : i32
    %c0_i32_0 = arith.constant 0 : i32
    %c0_i32_1 = arith.constant 0 : i32
    return %arg0, %c0_i32, %c0_i32_0 : i32, i32, i32
  }
  func.func @transform_1(%arg0: i32) -> (i32, i32, i32) {
    %c0_i32 = arith.constant 0 : i32
    %c0_i32_0 = arith.constant 0 : i32
    %c0_i32_1 = arith.constant 0 : i32
    return %arg0, %c0_i32, %c0_i32_0 : i32, i32, i32
  }
  func.func @transform_2(%arg0: i32) -> (i32, i32) {
    %c0_i32 = arith.constant 0 : i32
    %c0_i32_0 = arith.constant 0 : i32
    %c0_i32_1 = arith.constant 0 : i32
    return %c0_i32, %c0_i32_0 : i32, i32
  }
  func.func @transform_3(%arg0: i32) -> (i32, i32) {
    %c0_i32 = arith.constant 0 : i32
    %c0_i32_0 = arith.constant 0 : i32
    %c0_i32_1 = arith.constant 0 : i32
    return %c0_i32, %c0_i32_0 : i32, i32
  }
  func.func @transform_4(%arg0: i32) -> (i32, i32) {
    %c0_i32 = arith.constant 0 : i32
    %c0_i32_0 = arith.constant 0 : i32
    %c0_i32_1 = arith.constant 0 : i32
    return %c0_i32, %c0_i32_0 : i32, i32
  }
  func.func @transform_5(%arg0: i32) -> (i32, i32) {
    %c0_i32 = arith.constant 0 : i32
    %c0_i32_0 = arith.constant 0 : i32
    %c0_i32_1 = arith.constant 0 : i32
    return %c0_i32, %c0_i32_0 : i32, i32
  }
  func.func @transform_6(%arg0: i32) -> (i32, i32) {
    %c0_i32 = arith.constant 0 : i32
    %c0_i32_0 = arith.constant 0 : i32
    %c0_i32_1 = arith.constant 0 : i32
    return %c0_i32, %c0_i32_0 : i32, i32
  }
  func.func @transform_7(%arg0: i32) -> (i32, i32) {
    %c0_i32 = arith.constant 0 : i32
    %c0_i32_0 = arith.constant 0 : i32
    %c0_i32_1 = arith.constant 0 : i32
    return %c0_i32, %c0_i32_0 : i32, i32
  }
  func.func @transform_8(%arg0: i32) -> (i32, i32) {
    %c0_i32 = arith.constant 0 : i32
    %c0_i32_0 = arith.constant 0 : i32
    %c0_i32_1 = arith.constant 0 : i32
    return %c0_i32, %c0_i32_0 : i32, i32
  }
  func.func @transform_9(%arg0: i32) -> (i32, i32) {
    %c0_i32 = arith.constant 0 : i32
    %c0_i32_0 = arith.constant 0 : i32
    %c0_i32_1 = arith.constant 0 : i32
    return %c0_i32, %c0_i32_0 : i32, i32
  }
  func.func @transform_10(%arg0: i32) -> (i32, i32) {
    %c0_i32 = arith.constant 0 : i32
    %c0_i32_0 = arith.constant 0 : i32
    %c0_i32_1 = arith.constant 0 : i32
    return %c0_i32, %c0_i32_0 : i32, i32
  }
  func.func @transform_11(%arg0: i32) -> (i32, i32) {
    %c0_i32 = arith.constant 0 : i32
    %c0_i32_0 = arith.constant 0 : i32
    %c0_i32_1 = arith.constant 0 : i32
    return %c0_i32, %c0_i32_0 : i32, i32
  }
  func.func @transform_12(%arg0: i32) -> (i32, i32, i32) {
    %c0_i32 = arith.constant 0 : i32
    %c0_i32_0 = arith.constant 0 : i32
    %c0_i32_1 = arith.constant 0 : i32
    return %arg0, %c0_i32, %c0_i32_0 : i32, i32, i32
  }
  func.func @transform_13(%arg0: i32) -> (i32, i32, i32) {
    %c0_i32 = arith.constant 0 : i32
    %c0_i32_0 = arith.constant 0 : i32
    %c0_i32_1 = arith.constant 0 : i32
    return %arg0, %c0_i32, %c0_i32_0 : i32, i32, i32
  }
  func.func @transform_14(%arg0: i32) -> (i32, i32, i32) {
    %c0_i32 = arith.constant 0 : i32
    %c0_i32_0 = arith.constant 0 : i32
    %c0_i32_1 = arith.constant 0 : i32
    return %arg0, %c0_i32, %c0_i32_0 : i32, i32, i32
  }
}

</mosaic_0001>

<llo_original>
// kernel: tpu_custom_call.1
$region0: #{tpu_custom_call.1}
  #allocation0 [shape = 'u32[]', space=smem, size = 0x4, offset = 0x4, fixed_abs, tag = 'smem constant byte address 0x4 - core index']
  #allocation1 [shape = 'u32[144,128]{1,0:T(1,128)}', space=vmem, size = 0x12000, scoped, tag = 'internal scratch']
  %s0 = inlined_call_operand.vmem [shape: f32[2,8,4], index: 0, kind: input, shape index: {}]
  %s1 = inlined_call_operand.vmem [shape: f32[2,8,16], index: 1, kind: input, shape index: {}]
  %s2 = inlined_call_operand.vmem [shape: f32[4,32], index: 2, kind: input, shape index: {}]
  %s3 = inlined_call_operand.vmem [shape: f32[1,32], index: 3, kind: input, shape index: {}]
  %s4 = inlined_call_operand.vmem [shape: f32[16,8], index: 4, kind: input, shape index: {}]
  %s5 = inlined_call_operand.vmem [shape: f32[1,8], index: 5, kind: input, shape index: {}]
  %s6 = inlined_call_operand.vmem [shape: f32[4,5], index: 6, kind: input, shape index: {}]
  %s7 = inlined_call_operand.vmem [shape: f32[16,5], index: 7, kind: input, shape index: {}]
  %s8 = inlined_call_operand.vmem [shape: f32[1,5], index: 8, kind: input, shape index: {}]
  %s9 = inlined_call_operand.vmem [shape: f32[1,5], index: 9, kind: input, shape index: {}]
  %s10 = inlined_call_operand.vmem [shape: f32[8,8], index: 10, kind: input, shape index: {}]
  %s11 = inlined_call_operand.vmem [shape: f32[8,1], index: 11, kind: input, shape index: {}]
  %s12 = inlined_call_operand.vmem [shape: f32[2,8,4], index: 12, kind: output, shape index: {0}]
  %s13 = inlined_call_operand.vmem [shape: f32[2,8,4], index: 13, kind: output, shape index: {1}]
  %s14 = inlined_call_operand.hbm [shape: f32[2,8,128], index: 14, kind: output, shape index: {2}]
  %15 = xla_tuple %s12, %s13, %s14
  %s16 = sld [smem:[#allocation0]]
  $region97: #{tpu_custom_call.1} parent=0
    _
  %s18 = ssub.s32 1, %s16
  %s19 = scalar_select 0, %s18, %s16
  $region1: #{tpu_custom_call.1} parent=0
    #allocation2 [shape = 'u8[8192]{0}', space=vmem, size = 0x2000, scoped, tag = 'output window, operand 2']
    #allocation3 [shape = 's32[2]{0}', space=sflag, size = 0x8, scoped, tag = 'scoped memory for tpu_custom_call.1']
    %20 = vsyncpa [#allocation3], 0
    %s21 = scalar_lea.sflag [#allocation3], 1
    %22 = vsyncpa %s21, 0
    loop: start=0, step=1, limit=4
    $region2: #{tpu_custom_call.1} parent=1 // loop_pre_header
      _
    $region3: #{tpu_custom_call.1} parent=1 // loop_header
      %s24 = sphi 0, %s28
      %p25 = scmp.ge.s32.totalorder %s24, 4
      %s34 = sphi 0, %s36
      %s37 = sphi 0, %s34
      %s38 = sphi 0, %s37
      %s54 = sphi 0, %s38
      %s60 = sphi 0, %s62
      %s63 = sphi 0, %s60
      %s64 = sphi 0, %s63
      %s80 = sphi 0, %s64
      %s84 = sphi 0, %s84
      %s86 = sphi 0, %s84
      %s87 = sphi 0, %s86
      %s101 = sphi 0, %s87
      %s105 = sphi 0, %s105
      %s107 = sphi 0, %s105
      %s108 = sphi 0, %s107
      %s122 = sphi 0, %s108
      %s126 = sphi 0, %s126
      %s128 = sphi 0, %s126
      %s129 = sphi 0, %s128
      %s143 = sphi 0, %s129
      %s147 = sphi 0, %s147
      %s149 = sphi 0, %s147
      %s150 = sphi 0, %s149
      %s164 = sphi 0, %s150
      %s168 = sphi 0, %s168
      %s170 = sphi 0, %s168
      %s171 = sphi 0, %s170
      %s185 = sphi 0, %s171
      %s189 = sphi 0, %s189
      %s191 = sphi 0, %s189
      %s192 = sphi 0, %s191
      %s206 = sphi 0, %s192
      %s210 = sphi 0, %s210
      %s212 = sphi 0, %s210
      %s213 = sphi 0, %s212
      %s227 = sphi 0, %s213
      %s231 = sphi 0, %s231
      %s233 = sphi 0, %s231
      %s234 = sphi 0, %s233
      %s248 = sphi 0, %s234
      %s252 = sphi 0, %s252
      %s254 = sphi 0, %s252
      %s255 = sphi 0, %s254
      %s269 = sphi 0, %s255
      %s273 = sphi 0, %s273
      %s275 = sphi 0, %s273
      %s276 = sphi 0, %s275
      %s290 = sphi 0, %s276
      %s296 = sphi 0, %s298
      %s299 = sphi 0, %s296
      %s300 = sphi 0, %s299
      %s316 = sphi 0, %s300
      %s322 = sphi 0, %s324
      %s325 = sphi 0, %s322
      %s326 = sphi 0, %s325
      %s342 = sphi 0, %s326
      %s348 = sphi 0, %s350
      %s351 = sphi 0, %s348
      %s352 = sphi 0, %s351
      %s368 = sphi 0, %s352
    $region4: #{tpu_custom_call.1} parent=1 // loop_header_branch
      %27 = sbr.rel (%p25) target = $region8
    $region5: #{tpu_custom_call.1} parent=1 // loop_body
      %s29 = ssub.s32 %s24, 1
      %s30 = ssub.s32 %s24, 2
      %s31 = sadd.s32 %s24, 1
      %s32 = ssub.s32 %s24, %s31
      %p33 = scmp.eq.s32.totalorder %s32, 0
      %s35 = sadd.s32 %s34, 1
      %s36 = scalar_select %p33, %s34, %s35
      %p39 = pneg %p33
      %p40 = scmp.eq.s32.totalorder %s24, 1
      %p41 = por %p39, %p40
      %p42 = scmp.ne.s32.totalorder %s34, %s37
      %p43 = scmp.eq.s32.totalorder %s24, 0
      %p44 = por %p42, %p43
      %p45 = scmp.ne.s32.totalorder %s34, %s37
      %p46 = scmp.eq.s32.totalorder %s29, 1
      %p47 = por %p45, %p46
      %p48 = scmp.ne.s32.totalorder %s37, %s38
      %p49 = scmp.eq.s32.totalorder %s29, 0
      %p50 = por %p48, %p49
      %p51 = scmp.ne.s32.totalorder %s37, %s38
      %p52 = scmp.eq.s32.totalorder %s30, 1
      %p53 = por %p51, %p52
      %p55 = scmp.ne.s32.totalorder %s38, %s54
      %p56 = scmp.eq.s32.totalorder %s30, 0
      %p57 = por %p55, %p56
      %s58 = ssub.s32 %s24, %s31
      %p59 = scmp.eq.s32.totalorder %s58, 0
      %s61 = sadd.s32 %s60, 1
      %s62 = scalar_select %p59, %s60, %s61
      %p65 = pneg %p59
      %p66 = scmp.eq.s32.totalorder %s24, 1
      %p67 = por %p65, %p66
      %p68 = scmp.ne.s32.totalorder %s60, %s63
      %p69 = scmp.eq.s32.totalorder %s24, 0
      %p70 = por %p68, %p69
      %p71 = scmp.ne.s32.totalorder %s60, %s63
      %p72 = scmp.eq.s32.totalorder %s29, 1
      %p73 = por %p71, %p72
      %p74 = scmp.ne.s32.totalorder %s63, %s64
      %p75 = scmp.eq.s32.totalorder %s29, 0
      %p76 = por %p74, %p75
      %p77 = scmp.ne.s32.totalorder %s63, %s64
      %p78 = scmp.eq.s32.totalorder %s30, 1
      %p79 = por %p77, %p78
      %p81 = scmp.ne.s32.totalorder %s64, %s80
      %p82 = scmp.eq.s32.totalorder %s30, 0
      %p83 = por %p81, %p82
      %s85 = sadd.s32 %s84, 1
      %p88 = scmp.eq.s32.totalorder %s24, 1
      %p89 = scmp.ne.s32.totalorder %s84, %s86
      %p90 = scmp.eq.s32.totalorder %s24, 0
      %p91 = por %p89, %p90
      %p92 = scmp.ne.s32.totalorder %s84, %s86
      %p93 = scmp.eq.s32.totalorder %s29, 1
      %p94 = por %p92, %p93
      %p95 = scmp.ne.s32.totalorder %s86, %s87
      %p96 = scmp.eq.s32.totalorder %s29, 0
      %p97 = por %p95, %p96
      %p98 = scmp.ne.s32.totalorder %s86, %s87
      %p99 = scmp.eq.s32.totalorder %s30, 1
      %p100 = por %p98, %p99
      %p102 = scmp.ne.s32.totalorder %s87, %s101
      %p103 = scmp.eq.s32.totalorder %s30, 0
      %p104 = por %p102, %p103
      %s106 = sadd.s32 %s105, 1
      %p109 = scmp.eq.s32.totalorder %s24, 1
      %p110 = scmp.ne.s32.totalorder %s105, %s107
      %p111 = scmp.eq.s32.totalorder %s24, 0
      %p112 = por %p110, %p111
      %p113 = scmp.ne.s32.totalorder %s105, %s107
      %p114 = scmp.eq.s32.totalorder %s29, 1
      %p115 = por %p113, %p114
      %p116 = scmp.ne.s32.totalorder %s107, %s108
      %p117 = scmp.eq.s32.totalorder %s29, 0
      %p118 = por %p116, %p117
      %p119 = scmp.ne.s32.totalorder %s107, %s108
      %p120 = scmp.eq.s32.totalorder %s30, 1
      %p121 = por %p119, %p120
      %p123 = scmp.ne.s32.totalorder %s108, %s122
      %p124 = scmp.eq.s32.totalorder %s30, 0
      %p125 = por %p123, %p124
      %s127 = sadd.s32 %s126, 1
      %p130 = scmp.eq.s32.totalorder %s24, 1
      %p131 = scmp.ne.s32.totalorder %s126, %s128
      %p132 = scmp.eq.s32.totalorder %s24, 0
      %p133 = por %p131, %p132
      %p134 = scmp.ne.s32.totalorder %s126, %s128
      %p135 = scmp.eq.s32.totalorder %s29, 1
      %p136 = por %p134, %p135
      %p137 = scmp.ne.s32.totalorder %s128, %s129
      %p138 = scmp.eq.s32.totalorder %s29, 0
      %p139 = por %p137, %p138
      %p140 = scmp.ne.s32.totalorder %s128, %s129
      %p141 = scmp.eq.s32.totalorder %s30, 1
      %p142 = por %p140, %p141
      %p144 = scmp.ne.s32.totalorder %s129, %s143
      %p145 = scmp.eq.s32.totalorder %s30, 0
      %p146 = por %p144, %p145
      %s148 = sadd.s32 %s147, 1
      %p151 = scmp.eq.s32.totalorder %s24, 1
      %p152 = scmp.ne.s32.totalorder %s147, %s149
      %p153 = scmp.eq.s32.totalorder %s24, 0
      %p154 = por %p152, %p153
      %p155 = scmp.ne.s32.totalorder %s147, %s149
      %p156 = scmp.eq.s32.totalorder %s29, 1
      %p157 = por %p155, %p156
      %p158 = scmp.ne.s32.totalorder %s149, %s150
      %p159 = scmp.eq.s32.totalorder %s29, 0
      %p160 = por %p158, %p159
      %p161 = scmp.ne.s32.totalorder %s149, %s150
      %p162 = scmp.eq.s32.totalorder %s30, 1
      %p163 = por %p161, %p162
      %p165 = scmp.ne.s32.totalorder %s150, %s164
      %p166 = scmp.eq.s32.totalorder %s30, 0
      %p167 = por %p165, %p166
      %s169 = sadd.s32 %s168, 1
      %p172 = scmp.eq.s32.totalorder %s24, 1
      %p173 = scmp.ne.s32.totalorder %s168, %s170
      %p174 = scmp.eq.s32.totalorder %s24, 0
      %p175 = por %p173, %p174
      %p176 = scmp.ne.s32.totalorder %s168, %s170
      %p177 = scmp.eq.s32.totalorder %s29, 1
      %p178 = por %p176, %p177
      %p179 = scmp.ne.s32.totalorder %s170, %s171
      %p180 = scmp.eq.s32.totalorder %s29, 0
      %p181 = por %p179, %p180
      %p182 = scmp.ne.s32.totalorder %s170, %s171
      %p183 = scmp.eq.s32.totalorder %s30, 1
      %p184 = por %p182, %p183
      %p186 = scmp.ne.s32.totalorder %s171, %s185
      %p187 = scmp.eq.s32.totalorder %s30, 0
      %p188 = por %p186, %p187
      %s190 = sadd.s32 %s189, 1
      %p193 = scmp.eq.s32.totalorder %s24, 1
      %p194 = scmp.ne.s32.totalorder %s189, %s191
      %p195 = scmp.eq.s32.totalorder %s24, 0
      %p196 = por %p194, %p195
      %p197 = scmp.ne.s32.totalorder %s189, %s191
      %p198 = scmp.eq.s32.totalorder %s29, 1
      %p199 = por %p197, %p198
      %p200 = scmp.ne.s32.totalorder %s191, %s192
      %p201 = scmp.eq.s32.totalorder %s29, 0
      %p202 = por %p200, %p201
      %p203 = scmp.ne.s32.totalorder %s191, %s192
      %p204 = scmp.eq.s32.totalorder %s30, 1
      %p205 = por %p203, %p204
      %p207 = scmp.ne.s32.totalorder %s192, %s206
      %p208 = scmp.eq.s32.totalorder %s30, 0
      %p209 = por %p207, %p208
      %s211 = sadd.s32 %s210, 1
      %p214 = scmp.eq.s32.totalorder %s24, 1
      %p215 = scmp.ne.s32.totalorder %s210, %s212
      %p216 = scmp.eq.s32.totalorder %s24, 0
      %p217 = por %p215, %p216
      %p218 = scmp.ne.s32.totalorder %s210, %s212
      %p219 = scmp.eq.s32.totalorder %s29, 1
      %p220 = por %p218, %p219
      %p221 = scmp.ne.s32.totalorder %s212, %s213
      %p222 = scmp.eq.s32.totalorder %s29, 0
      %p223 = por %p221, %p222
      %p224 = scmp.ne.s32.totalorder %s212, %s213
      %p225 = scmp.eq.s32.totalorder %s30, 1
      %p226 = por %p224, %p225
      %p228 = scmp.ne.s32.totalorder %s213, %s227
      %p229 = scmp.eq.s32.totalorder %s30, 0
      %p230 = por %p228, %p229
      %s232 = sadd.s32 %s231, 1
      %p235 = scmp.eq.s32.totalorder %s24, 1
      %p236 = scmp.ne.s32.totalorder %s231, %s233
      %p237 = scmp.eq.s32.totalorder %s24, 0
      %p238 = por %p236, %p237
      %p239 = scmp.ne.s32.totalorder %s231, %s233
      %p240 = scmp.eq.s32.totalorder %s29, 1
      %p241 = por %p239, %p240
      %p242 = scmp.ne.s32.totalorder %s233, %s234
      %p243 = scmp.eq.s32.totalorder %s29, 0
      %p244 = por %p242, %p243
      %p245 = scmp.ne.s32.totalorder %s233, %s234
      %p246 = scmp.eq.s32.totalorder %s30, 1
      %p247 = por %p245, %p246
      %p249 = scmp.ne.s32.totalorder %s234, %s248
      %p250 = scmp.eq.s32.totalorder %s30, 0
      %p251 = por %p249, %p250
      %s253 = sadd.s32 %s252, 1
      %p256 = scmp.eq.s32.totalorder %s24, 1
      %p257 = scmp.ne.s32.totalorder %s252, %s254
      %p258 = scmp.eq.s32.totalorder %s24, 0
      %p259 = por %p257, %p258
      %p260 = scmp.ne.s32.totalorder %s252, %s254
      %p261 = scmp.eq.s32.totalorder %s29, 1
      %p262 = por %p260, %p261
      %p263 = scmp.ne.s32.totalorder %s254, %s255
      %p264 = scmp.eq.s32.totalorder %s29, 0
      %p265 = por %p263, %p264
      %p266 = scmp.ne.s32.totalorder %s254, %s255
      %p267 = scmp.eq.s32.totalorder %s30, 1
      %p268 = por %p266, %p267
      %p270 = scmp.ne.s32.totalorder %s255, %s269
      %p271 = scmp.eq.s32.totalorder %s30, 0
      %p272 = por %p270, %p271
      %s274 = sadd.s32 %s273, 1
      %p277 = scmp.eq.s32.totalorder %s24, 1
      %p278 = scmp.ne.s32.totalorder %s273, %s275
      %p279 = scmp.eq.s32.totalorder %s24, 0
      %p280 = por %p278, %p279
      %p281 = scmp.ne.s32.totalorder %s273, %s275
      %p282 = scmp.eq.s32.totalorder %s29, 1
      %p283 = por %p281, %p282
      %p284 = scmp.ne.s32.totalorder %s275, %s276
      %p285 = scmp.eq.s32.totalorder %s29, 0
      %p286 = por %p284, %p285
      %p287 = scmp.ne.s32.totalorder %s275, %s276
      %p288 = scmp.eq.s32.totalorder %s30, 1
      %p289 = por %p287, %p288
      %p291 = scmp.ne.s32.totalorder %s276, %s290
      %p292 = scmp.eq.s32.totalorder %s30, 0
      %p293 = por %p291, %p292
      %s294 = ssub.s32 %s24, %s31
      %p295 = scmp.eq.s32.totalorder %s294, 0
      %s297 = sadd.s32 %s296, 1
      %s298 = scalar_select %p295, %s296, %s297
      %p301 = pneg %p295
      %p302 = scmp.eq.s32.totalorder %s24, 1
      %p303 = por %p301, %p302
      %p304 = scmp.ne.s32.totalorder %s296, %s299
      %p305 = scmp.eq.s32.totalorder %s24, 0
      %p306 = por %p304, %p305
      %p307 = scmp.ne.s32.totalorder %s296, %s299
      %p308 = scmp.eq.s32.totalorder %s29, 1
      %p309 = por %p307, %p308
      %p310 = scmp.ne.s32.totalorder %s299, %s300
      %p311 = scmp.eq.s32.totalorder %s29, 0
      %p312 = por %p310, %p311
      %p313 = scmp.ne.s32.totalorder %s299, %s300
      %p314 = scmp.eq.s32.totalorder %s30, 1
      %p315 = por %p313, %p314
      %p317 = scmp.ne.s32.totalorder %s300, %s316
      %p318 = scmp.eq.s32.totalorder %s30, 0
      %p319 = por %p317, %p318
      %s320 = ssub.s32 %s24, %s31
      %p321 = scmp.eq.s32.totalorder %s320, 0
      %s323 = sadd.s32 %s322, 1
      %s324 = scalar_select %p321, %s322, %s323
      %p327 = pneg %p321
      %p328 = scmp.eq.s32.totalorder %s24, 1
      %p329 = por %p327, %p328
      %p330 = scmp.ne.s32.totalorder %s322, %s325
      %p331 = scmp.eq.s32.totalorder %s24, 0
      %p332 = por %p330, %p331
      %p333 = scmp.ne.s32.totalorder %s322, %s325
      %p334 = scmp.eq.s32.totalorder %s29, 1
      %p335 = por %p333, %p334
      %p336 = scmp.ne.s32.totalorder %s325, %s326
      %p337 = scmp.eq.s32.totalorder %s29, 0
      %p338 = por %p336, %p337
      %p339 = scmp.ne.s32.totalorder %s325, %s326
      %p340 = scmp.eq.s32.totalorder %s30, 1
      %p341 = por %p339, %p340
      %p343 = scmp.ne.s32.totalorder %s326, %s342
      %p344 = scmp.eq.s32.totalorder %s30, 0
      %p345 = por %p343, %p344
      %s346 = ssub.s32 %s24, %s31
      %p347 = scmp.eq.s32.totalorder %s346, 0
      %s349 = sadd.s32 %s348, 1
      %s350 = scalar_select %p347, %s348, %s349
      %p353 = pneg %p347
      %p354 = scmp.eq.s32.totalorder %s24, 1
      %p355 = por %p353, %p354
      %p356 = scmp.ne.s32.totalorder %s348, %s351
      %p357 = scmp.eq.s32.totalorder %s24, 0
      %p358 = por %p356, %p357
      %p359 = scmp.ne.s32.totalorder %s348, %s351
      %p360 = scmp.eq.s32.totalorder %s29, 1
      %p361 = por %p359, %p360
      %p362 = scmp.ne.s32.totalorder %s351, %s352
      %p363 = scmp.eq.s32.totalorder %s29, 0
      %p364 = por %p362, %p363
      %p365 = scmp.ne.s32.totalorder %s351, %s352
      %p366 = scmp.eq.s32.totalorder %s30, 1
      %p367 = por %p365, %p366
      %p369 = scmp.ne.s32.totalorder %s352, %s368
      %p370 = scmp.eq.s32.totalorder %s30, 0
      %p371 = por %p369, %p370
      %p372 = scmp.le.s32.totalorder 1, %s24
      %p373 = scmp.lt.s32.totalorder %s24, 3
      %p374 = pnand %p372, %p373
      %p375 = pneg %p374
      // Predicated region
      $region9: #{tpu_custom_call.1} parent=5 // pred_check
        _
      $region10: #{tpu_custom_call.1} parent=5 // pred_check_branch
        %377 = sbr.rel (%p374) target = $region12
      $region11: #{tpu_custom_call.1} parent=5 // pred_region
        %s378 = ssub.s32 %s24, 1
        // Predicated region
        $region13: #{tpu_custom_call.1} parent=11 // pred_check
          %p379 = pneg %p97
        $region14: #{tpu_custom_call.1} parent=11 // pred_check_branch
          %381 = sbr.rel (%p379) target = $region16
        $region15: #{tpu_custom_call.1} parent=11 // pred_region
          _
        $region16: #{tpu_custom_call.1} parent=11 // pred_fallthru
          _
        // Predicated region
        $region17: #{tpu_custom_call.1} parent=11 // pred_check
          %p382 = pneg %p118
        $region18: #{tpu_custom_call.1} parent=11 // pred_check_branch
          %384 = sbr.rel (%p382) target = $region20
        $region19: #{tpu_custom_call.1} parent=11 // pred_region
          _
        $region20: #{tpu_custom_call.1} parent=11 // pred_fallthru
          _
        // Predicated region
        $region21: #{tpu_custom_call.1} parent=11 // pred_check
          %p385 = pneg %p139
        $region22: #{tpu_custom_call.1} parent=11 // pred_check_branch
          %387 = sbr.rel (%p385) target = $region24
        $region23: #{tpu_custom_call.1} parent=11 // pred_region
          _
        $region24: #{tpu_custom_call.1} parent=11 // pred_fallthru
          _
        // Predicated region
        $region25: #{tpu_custom_call.1} parent=11 // pred_check
          %p388 = pneg %p160
        $region26: #{tpu_custom_call.1} parent=11 // pred_check_branch
          %390 = sbr.rel (%p388) target = $region28
        $region27: #{tpu_custom_call.1} parent=11 // pred_region
          _
        $region28: #{tpu_custom_call.1} parent=11 // pred_fallthru
          _
        // Predicated region
        $region29: #{tpu_custom_call.1} parent=11 // pred_check
          %p391 = pneg %p181
        $region30: #{tpu_custom_call.1} parent=11 // pred_check_branch
          %393 = sbr.rel (%p391) target = $region32
        $region31: #{tpu_custom_call.1} parent=11 // pred_region
          _
        $region32: #{tpu_custom_call.1} parent=11 // pred_fallthru
          _
        // Predicated region
        $region33: #{tpu_custom_call.1} parent=11 // pred_check
          %p394 = pneg %p202
        $region34: #{tpu_custom_call.1} parent=11 // pred_check_branch
          %396 = sbr.rel (%p394) target = $region36
        $region35: #{tpu_custom_call.1} parent=11 // pred_region
          _
        $region36: #{tpu_custom_call.1} parent=11 // pred_fallthru
          _
        // Predicated region
        $region37: #{tpu_custom_call.1} parent=11 // pred_check
          %p397 = pneg %p223
        $region38: #{tpu_custom_call.1} parent=11 // pred_check_branch
          %399 = sbr.rel (%p397) target = $region40
        $region39: #{tpu_custom_call.1} parent=11 // pred_region
          _
        $region40: #{tpu_custom_call.1} parent=11 // pred_fallthru
          _
        // Predicated region
        $region41: #{tpu_custom_call.1} parent=11 // pred_check
          %p400 = pneg %p244
        $region42: #{tpu_custom_call.1} parent=11 // pred_check_branch
          %402 = sbr.rel (%p400) target = $region44
        $region43: #{tpu_custom_call.1} parent=11 // pred_region
          _
        $region44: #{tpu_custom_call.1} parent=11 // pred_fallthru
          _
        // Predicated region
        $region45: #{tpu_custom_call.1} parent=11 // pred_check
          %p403 = pneg %p265
        $region46: #{tpu_custom_call.1} parent=11 // pred_check_branch
          %405 = sbr.rel (%p403) target = $region48
        $region47: #{tpu_custom_call.1} parent=11 // pred_region
          _
        $region48: #{tpu_custom_call.1} parent=11 // pred_fallthru
          _
        // Predicated region
        $region49: #{tpu_custom_call.1} parent=11 // pred_check
          %p406 = pneg %p286
        $region50: #{tpu_custom_call.1} parent=11 // pred_check_branch
          %408 = sbr.rel (%p406) target = $region52
        $region51: #{tpu_custom_call.1} parent=11 // pred_region
          _
        $region52: #{tpu_custom_call.1} parent=11 // pred_fallthru
          _
      $region12: #{tpu_custom_call.1} parent=5 // pred_fallthru
        _
      %p409 = scmp.lt.s32.totalorder %s24, 2
      // Predicated region
      $region53: #{tpu_custom_call.1} parent=5 // pred_check
        %p410 = pneg %p409
      $region54: #{tpu_custom_call.1} parent=5 // pred_check_branch
        %412 = sbr.rel (%p410) target = $region56
      $region55: #{tpu_custom_call.1} parent=5 // pred_region
        // Predicated region
        $region57: #{tpu_custom_call.1} parent=55 // pred_check
          %p413 = pneg %p44
        $region58: #{tpu_custom_call.1} parent=55 // pred_check_branch
          %415 = sbr.rel (%p413) target = $region60
        $region59: #{tpu_custom_call.1} parent=55 // pred_region
          %p416 = scmp.lt.s32.totalorder %s24, 1
          %s417 = scalar_select %p416, %s24, 1
          %s418 = smul.addr %s417, 8
          %s419 = scalar_lea.vmem %s0, %s418
        $region60: #{tpu_custom_call.1} parent=55 // pred_fallthru
          _
        // Predicated region
        $region61: #{tpu_custom_call.1} parent=55 // pred_check
          %p420 = pneg %p70
        $region62: #{tpu_custom_call.1} parent=55 // pred_check_branch
          %422 = sbr.rel (%p420) target = $region64
        $region63: #{tpu_custom_call.1} parent=55 // pred_region
          %p423 = scmp.lt.s32.totalorder %s24, 1
          %s424 = scalar_select %p423, %s24, 1
          %s425 = smul.addr %s424, 8
          %s426 = scalar_lea.vmem %s1, %s425
        $region64: #{tpu_custom_call.1} parent=55 // pred_fallthru
          _
      $region56: #{tpu_custom_call.1} parent=5 // pred_fallthru
        _
      %p427 = scmp.le.s32.totalorder 1, %s24
      %p428 = scmp.lt.s32.totalorder %s24, 3
      %p429 = pnand %p427, %p428
      %p430 = pneg %p429
      // Predicated region
      $region65: #{tpu_custom_call.1} parent=5 // pred_check
        _
      $region66: #{tpu_custom_call.1} parent=5 // pred_check_branch
        %432 = sbr.rel (%p429) target = $region68
      $region67: #{tpu_custom_call.1} parent=5 // pred_region
        %s433 = ssub.s32 %s24, 1
        %p434 = scmp.lt.s32.totalorder %s29, 1
        %s435 = scalar_select %p434, %s29, 1
        %s436 = smul.addr %s435, 8
        %s437 = scalar_lea.vmem %s0, %s436
        %p438 = pneg %p50
        %p439 = pneg %p47
        %p440 = scmp.lt.s32.totalorder %s29, 1
        %s441 = scalar_select %p440, %s29, 1
        %s442 = smul.addr %s441, 8
        %s443 = scalar_lea.vmem %s1, %s442
        %p444 = pneg %p76
        %p445 = pneg %p73
        %p446 = pneg %p97
        %p447 = pneg %p94
        %p448 = pneg %p118
        %p449 = pneg %p115
        %p450 = pneg %p139
        %p451 = pneg %p136
        %p452 = pneg %p160
        %p453 = pneg %p157
        %p454 = pneg %p181
        %p455 = pneg %p178
        %p456 = pneg %p202
        %p457 = pneg %p199
        %p458 = pneg %p223
        %p459 = pneg %p220
        %p460 = pneg %p244
        %p461 = pneg %p241
        %p462 = pneg %p265
        %p463 = pneg %p262
        %p464 = pneg %p286
        %p465 = pneg %p283
        %p466 = pneg %p312
        %p467 = pneg %p309
        %p468 = scmp.lt.s32.totalorder %s29, 1
        %s469 = scalar_select %p468, %s29, 1
        %s470 = smul.addr %s469, 8
        %s471 = scalar_lea.vmem %s12, %s470
        %p472 = pneg %p338
        %p473 = pneg %p335
        %p474 = scmp.lt.s32.totalorder %s29, 1
        %s475 = scalar_select %p474, %s29, 1
        %s476 = smul.addr %s475, 8
        %s477 = scalar_lea.vmem %s13, %s476
        %p478 = pneg %p364
        %p479 = pneg %p361
        %s480 = sand.u32 %s351, 1
        %s481 = scalar_lea.sflag [#allocation3], %s480
        %s482 = sand.u32 %s351, 1
        %s483 = smul.addr %s482, 8
        %s484 = scalar_lea.vmem [#allocation2], %s483
        %p485 = scmp.lt.s32.totalorder %s29, 1
        %s486 = scalar_select %p485, %s29, 1
        %s487 = smul.addr %s486, 8
        %s488 = scalar_lea.vmem %s0, %s487
        %p489 = scmp.lt.s32.totalorder %s29, 1
        %s490 = scalar_select %p489, %s29, 1
        %s491 = smul.addr %s490, 8
        %s492 = scalar_lea.vmem %s1, %s491
        %p493 = scmp.lt.s32.totalorder %s29, 1
        %s494 = scalar_select %p493, %s29, 1
        %s495 = smul.addr %s494, 8
        %s496 = scalar_lea.vmem %s12, %s495
        %p497 = scmp.lt.s32.totalorder %s29, 1
        %s498 = scalar_select %p497, %s29, 1
        %s499 = smul.addr %s498, 8
        %s500 = scalar_lea.vmem %s13, %s499
        %v501 = vld [vmem:[%s488] sm:$0xff]
        %v502 = vld [vmem:[%s2] sm:$0xf]
        %v503 = vld [vmem:[%s3] sm:$0x1]
        %v505 = vlaneseq
        %v506 = vshrl.u32 %v505, 7
        %v507 = vsub.s32 0, %v506
        %v508 = vrot.slane %v503, %v507
        %vm510 = vcmask 31744
        %v512 = vsel %vm510, %v501, 0
        %vm514 = vcmask 1043456
        %v516 = vsel %vm514, %v502, 0
        %518 = vmatprep.subr.mxu0 0.0
        %519 = vmatpush1.msra.mxu0 %v516
        %520 = vmatprep.subr.mxu0 0.0
        %521 = vmatpush1.msra.mxu0 0.0
        %522 = vmatprep.subr.mxu0 0.0
        %523 = vmatpush1.msra.mxu0 0.0
        %524 = vmatprep.subr.mxu0 0.0
        %525 = vmatpush1.msra.mxu0 0.0
        %526 = vmatprep.subr.mxu0 0.0
        %527 = vmatpush1.msra.mxu0 0.0
        %528 = vmatprep.subr.mxu0 0.0
        %529 = vmatpush1.msra.mxu0 0.0
        %530 = vmatprep.subr.mxu0 0.0
        %531 = vmatpush1.msra.mxu0 0.0
        %532 = vmatprep.subr.mxu0 0.0
        %533 = vmatpush1.msra.mxu0 0.0
        %534 = vmatprep.subr.mxu0 0.0
        %535 = vmatpush1.msra.mxu0 0.0
        %536 = vmatprep.subr.mxu0 0.0
        %537 = vmatpush1.msra.mxu0 0.0
        %538 = vmatprep.subr.mxu0 0.0
        %539 = vmatpush1.msra.mxu0 0.0
        %540 = vmatprep.subr.mxu0 0.0
        %541 = vmatpush1.msra.mxu0 0.0
        %542 = vmatprep.subr.mxu0 0.0
        %543 = vmatpush1.msra.mxu0 0.0
        %544 = vmatprep.subr.mxu0 0.0
        %545 = vmatpush1.msra.mxu0 0.0
        %546 = vmatprep.subr.mxu0 0.0
        %547 = vmatpush1.msra.mxu0 0.0
        %548 = vmatprep.subr.mxu0 0.0
        %549 = vmatpush1.msra.mxu0 0.0
        %550 = vmatprep.subr.mxu0 0.0
        %551 = vmatpush1.msra.mxu0 0.0
        %552 = vmatprep.subr.mxu0 0.0
        %553 = vmatpush1.msra.mxu0 0.0
        %554 = vmatprep.subr.mxu0 0.0
        %555 = vmatpush1.msra.mxu0 0.0
        %556 = vmatprep.subr.mxu0 0.0
        %557 = vmatpush1.msra.mxu0 0.0
        %558 = vmatprep.subr.mxu0 0.0
        %559 = vmatpush1.msra.mxu0 0.0
        %560 = vmatprep.subr.mxu0 0.0
        %561 = vmatpush1.msra.mxu0 0.0
        %562 = vmatprep.subr.mxu0 0.0
        %563 = vmatpush1.msra.mxu0 0.0
        %564 = vmatprep.subr.mxu0 0.0
        %565 = vmatpush1.msra.mxu0 0.0
        %566 = vmatprep.subr.mxu0 0.0
        %567 = vmatpush1.msra.mxu0 0.0
        %568 = vmatprep.subr.mxu0 0.0
        %569 = vmatpush1.msra.mxu0 0.0
        %570 = vmatprep.subr.mxu0 0.0
        %571 = vmatpush1.msra.mxu0 0.0
        %572 = vmatprep.subr.mxu0 0.0
        %573 = vmatpush1.msra.mxu0 0.0
        %574 = vmatprep.subr.mxu0 0.0
        %575 = vmatpush1.msra.mxu0 0.0
        %576 = vmatprep.subr.mxu0 0.0
        %577 = vmatpush1.msra.mxu0 0.0
        %578 = vmatprep.subr.mxu0 0.0
        %579 = vmatpush1.msra.mxu0 0.0
        %580 = vmatprep.subr.mxu0 0.0
        %581 = vmatpush1.msra.mxu0 0.0
        %582 = vmatprep.mubr.f32.mxu0 0.0
        %583 = vmatmul.mubr.f32.gmra.mrb[0].mxu0 %v512
        %v584 = vpop.f32.mrb[0].mxu0
        %v585 = vadd.f32 %v508, %v584
        %v586 = vpop.f32.mrb[0].mxu0
        %587 = vdwg.mxu0
        %v588 = vmax.f32 %v585, 0.0
        %v589 = vand.u32 2147483647, %v585
        %v590 = vsub.f32 0.0, %v589
        %v591 = vmul.f32 %v590, 1.442695
        %v592 = vpow.pop %v591
        %v593 = vadd.f32 %v592, 1.0
        %v594 = vlog2.pop %v593
        %v595 = vmul.f32 %v594, 0.6931472
        %v596 = vmul.f32 -0.5, %v592
        %v597 = vadd.f32 %v596, 1.0
        %v598 = vmul.f32 %v597, %v592
        %v599 = vand.u32 2147483647, %v592
        %vm600 = vcmp.lt.f32.partialorder %v599, 0.0004427343
        %v601 = vsel %vm600, %v598, %v595
        %v602 = vadd.f32 %v588, %v601
        %v603 = vadd.f32 %v602, 1e-06
        %v604 = vld [vmem:[%s492] sm:$0xff]
        %606 = vrot.lane.b32.xlu0 %v604, 16
        %v607 = vpop.permute.xlu0 %606
        %v609 = vmul.f32 %v603, %v607
        %611 = vrot.lane.b32.xlu0 %v609, 112
        %v612 = vpop.permute.xlu0 %611
        %v614 = vadd.f32 %v585, %v612
        %v615 = vld [vmem:[%s4] sm:$0xff]
        %v616 = vld [vmem:[%s4 + $0x8] sm:$0xff]
        %v617 = vld [vmem:[%s5] sm:$0x1]
        %v619 = vlaneseq
        %v620 = vshrl.u32 %v619, 7
        %v621 = vsub.s32 0, %v620
        %v622 = vrot.slane %v617, %v621
        %vm624 = vcmask 130048
        %v626 = vsel %vm624, %v614, 0
        %628 = vmatprep.subr.mxu0 0.0
        %629 = vmatpush1.msra.mxu0 %v615
        %630 = vmatprep.subr.mxu0 0.0
        %631 = vmatpush1.msra.mxu0 %v616
        %632 = vmatprep.subr.mxu0 0.0
        %633 = vmatpush1.msra.mxu0 0.0
        %634 = vmatprep.subr.mxu0 0.0
        %635 = vmatpush1.msra.mxu0 0.0
        %636 = vmatprep.subr.mxu0 0.0
        %637 = vmatpush1.msra.mxu0 0.0
        %638 = vmatprep.subr.mxu0 0.0
        %639 = vmatpush1.msra.mxu0 0.0
        %640 = vmatprep.subr.mxu0 0.0
        %641 = vmatpush1.msra.mxu0 0.0
        %642 = vmatprep.subr.mxu0 0.0
        %643 = vmatpush1.msra.mxu0 0.0
        %644 = vmatprep.subr.mxu0 0.0
        %645 = vmatpush1.msra.mxu0 0.0
        %646 = vmatprep.subr.mxu0 0.0
        %647 = vmatpush1.msra.mxu0 0.0
        %648 = vmatprep.subr.mxu0 0.0
        %649 = vmatpush1.msra.mxu0 0.0
        %650 = vmatprep.subr.mxu0 0.0
        %651 = vmatpush1.msra.mxu0 0.0
        %652 = vmatprep.subr.mxu0 0.0
        %653 = vmatpush1.msra.mxu0 0.0
        %654 = vmatprep.subr.mxu0 0.0
        %655 = vmatpush1.msra.mxu0 0.0
        %656 = vmatprep.subr.mxu0 0.0
        %657 = vmatpush1.msra.mxu0 0.0
        %658 = vmatprep.subr.mxu0 0.0
        %659 = vmatpush1.msra.mxu0 0.0
        %660 = vmatprep.subr.mxu0 0.0
        %661 = vmatpush1.msra.mxu0 0.0
        %662 = vmatprep.subr.mxu0 0.0
        %663 = vmatpush1.msra.mxu0 0.0
        %664 = vmatprep.subr.mxu0 0.0
        %665 = vmatpush1.msra.mxu0 0.0
        %666 = vmatprep.subr.mxu0 0.0
        %667 = vmatpush1.msra.mxu0 0.0
        %668 = vmatprep.subr.mxu0 0.0
        %669 = vmatpush1.msra.mxu0 0.0
        %670 = vmatprep.subr.mxu0 0.0
        %671 = vmatpush1.msra.mxu0 0.0
        %672 = vmatprep.subr.mxu0 0.0
        %673 = vmatpush1.msra.mxu0 0.0
        %674 = vmatprep.subr.mxu0 0.0
        %675 = vmatpush1.msra.mxu0 0.0
        %676 = vmatprep.subr.mxu0 0.0
        %677 = vmatpush1.msra.mxu0 0.0
        %678 = vmatprep.subr.mxu0 0.0
        %679 = vmatpush1.msra.mxu0 0.0
        %680 = vmatprep.subr.mxu0 0.0
        %681 = vmatpush1.msra.mxu0 0.0
        %682 = vmatprep.subr.mxu0 0.0
        %683 = vmatpush1.msra.mxu0 0.0
        %684 = vmatprep.subr.mxu0 0.0
        %685 = vmatpush1.msra.mxu0 0.0
        %686 = vmatprep.subr.mxu0 0.0
        %687 = vmatpush1.msra.mxu0 0.0
        %688 = vmatprep.subr.mxu0 0.0
        %689 = vmatpush1.msra.mxu0 0.0
        %690 = vmatprep.subr.mxu0 0.0
        %691 = vmatpush1.msra.mxu0 0.0
        %692 = vmatprep.mubr.f32.mxu0 0.0
        %693 = vmatmul.mubr.f32.gmra.mrb[0].mxu0 %v626
        %v694 = vpop.f32.mrb[0].mxu0
        %v695 = vadd.f32 %v622, %v694
        %v696 = vpop.f32.mrb[0].mxu0
        %697 = vdwg.mxu0
        %698 = vst.msk [vmem:[%s496] sm:$0xff] %vm510, %v695
        %v699 = vld [vmem:[%s10] sm:$0xff]
        %v700 = vld [vmem:[%s11] sm:$0xff]
        %702 = vset.pattern.permute.xlu0 0
        %703 = vperm.xlu0 %702, %v700
        %v704 = vpop.permute.xlu0 %703
        %706 = vxpose.xlu0.b32.start [1/16] %v699, 128
        %707 = vxpose.xlu0.b32.cont [2/16] 0.0, 128
        %708 = vxpose.xlu0.b32.cont [3/16] 0.0, 128
        %709 = vxpose.xlu0.b32.cont [4/16] 0.0, 128
        %710 = vxpose.xlu0.b32.cont [5/16] 0.0, 128
        %711 = vxpose.xlu0.b32.cont [6/16] 0.0, 128
        %712 = vxpose.xlu0.b32.cont [7/16] 0.0, 128
        %713 = vxpose.xlu0.b32.cont [8/16] 0.0, 128
        %714 = vxpose.xlu0.b32.cont [9/16] 0.0, 128
        %715 = vxpose.xlu0.b32.cont [10/16] 0.0, 128
        %716 = vxpose.xlu0.b32.cont [11/16] 0.0, 128
        %717 = vxpose.xlu0.b32.cont [12/16] 0.0, 128
        %718 = vxpose.xlu0.b32.cont [13/16] 0.0, 128
        %719 = vxpose.xlu0.b32.cont [14/16] 0.0, 128
        %720 = vxpose.xlu0.b32.cont [15/16] 0.0, 128
        %721 = vxpose.xlu0.b32.end [16/16] 0.0, 128
        %v722 = vpop.trf.xlu0
        %v723 = vpop.trf.xlu0
        %v724 = vpop.trf.xlu0
        %v725 = vpop.trf.xlu0
        %v726 = vpop.trf.xlu0
        %v727 = vpop.trf.xlu0
        %v728 = vpop.trf.xlu0
        %v729 = vpop.trf.xlu0
        %v730 = vpop.trf.xlu0
        %v731 = vpop.trf.xlu0
        %v732 = vpop.trf.xlu0
        %v733 = vpop.trf.xlu0
        %v734 = vpop.trf.xlu0
        %v735 = vpop.trf.xlu0
        %v736 = vpop.trf.xlu0
        %v737 = vpop.trf.xlu0
        %739 = vrot.lane.b32.xlu0 %v695, 124
        %v740 = vpop.permute.xlu0 %739
        %vm742 = vcmask 64512
        %v744 = vsel %vm742, %v722, 0
        %746 = vmatprep.subr.mxu0 0.0
        %747 = vmatpush1.msra.mxu0 %v740
        %748 = vmatprep.subr.mxu0 0.0
        %749 = vmatpush1.msra.mxu0 0.0
        %750 = vmatprep.subr.mxu0 0.0
        %751 = vmatpush1.msra.mxu0 0.0
        %752 = vmatprep.subr.mxu0 0.0
        %753 = vmatpush1.msra.mxu0 0.0
        %754 = vmatprep.subr.mxu0 0.0
        %755 = vmatpush1.msra.mxu0 0.0
        %756 = vmatprep.subr.mxu0 0.0
        %757 = vmatpush1.msra.mxu0 0.0
        %758 = vmatprep.subr.mxu0 0.0
        %759 = vmatpush1.msra.mxu0 0.0
        %760 = vmatprep.subr.mxu0 0.0
        %761 = vmatpush1.msra.mxu0 0.0
        %762 = vmatprep.subr.mxu0 0.0
        %763 = vmatpush1.msra.mxu0 0.0
        %764 = vmatprep.subr.mxu0 0.0
        %765 = vmatpush1.msra.mxu0 0.0
        %766 = vmatprep.subr.mxu0 0.0
        %767 = vmatpush1.msra.mxu0 0.0
        %768 = vmatprep.subr.mxu0 0.0
        %769 = vmatpush1.msra.mxu0 0.0
        %770 = vmatprep.subr.mxu0 0.0
        %771 = vmatpush1.msra.mxu0 0.0
        %772 = vmatprep.subr.mxu0 0.0
        %773 = vmatpush1.msra.mxu0 0.0
        %774 = vmatprep.subr.mxu0 0.0
        %775 = vmatpush1.msra.mxu0 0.0
        %776 = vmatprep.subr.mxu0 0.0
        %777 = vmatpush1.msra.mxu0 0.0
        %778 = vmatprep.subr.mxu0 0.0
        %779 = vmatpush1.msra.mxu0 0.0
        %780 = vmatprep.subr.mxu0 0.0
        %781 = vmatpush1.msra.mxu0 0.0
        %782 = vmatprep.subr.mxu0 0.0
        %783 = vmatpush1.msra.mxu0 0.0
        %784 = vmatprep.subr.mxu0 0.0
        %785 = vmatpush1.msra.mxu0 0.0
        %786 = vmatprep.subr.mxu0 0.0
        %787 = vmatpush1.msra.mxu0 0.0
        %788 = vmatprep.subr.mxu0 0.0
        %789 = vmatpush1.msra.mxu0 0.0
        %790 = vmatprep.subr.mxu0 0.0
        %791 = vmatpush1.msra.mxu0 0.0
        %792 = vmatprep.subr.mxu0 0.0
        %793 = vmatpush1.msra.mxu0 0.0
        %794 = vmatprep.subr.mxu0 0.0
        %795 = vmatpush1.msra.mxu0 0.0
        %796 = vmatprep.subr.mxu0 0.0
        %797 = vmatpush1.msra.mxu0 0.0
        %798 = vmatprep.subr.mxu0 0.0
        %799 = vmatpush1.msra.mxu0 0.0
        %800 = vmatprep.subr.mxu0 0.0
        %801 = vmatpush1.msra.mxu0 0.0
        %802 = vmatprep.subr.mxu0 0.0
        %803 = vmatpush1.msra.mxu0 0.0
        %804 = vmatprep.subr.mxu0 0.0
        %805 = vmatpush1.msra.mxu0 0.0
        %806 = vmatprep.subr.mxu0 0.0
        %807 = vmatpush1.msra.mxu0 0.0
        %808 = vmatprep.subr.mxu0 0.0
        %809 = vmatpush1.msra.mxu0 0.0
        %810 = vmatprep.mubr.f32.mxu0 0.0
        %811 = vmatmul.mubr.f32.gmra.mrb[0].mxu0 %v744
        %v812 = vpop.f32.mrb[0].mxu0
        %v813 = vadd.f32 %v704, %v812
        %v814 = vpop.f32.mrb[0].mxu0
        %815 = vdwg.mxu0
        %816 = vst.msk [vmem:[%s500] sm:$0xff] %vm510, %v813
        %v817 = vld [vmem:[%s6] sm:$0xf]
        %v818 = vld [vmem:[%s7] sm:$0xff]
        %v819 = vld [vmem:[%s7 + $0x8] sm:$0xff]
        %820 = vmatprep.subr.mxu0 0.0
        %821 = vmatpush1.msra.mxu0 %v818
        %822 = vmatprep.subr.mxu0 0.0
        %823 = vmatpush1.msra.mxu0 %v819
        %824 = vmatprep.subr.mxu0 0.0
        %825 = vmatpush1.msra.mxu0 0.0
        %826 = vmatprep.subr.mxu0 0.0
        %827 = vmatpush1.msra.mxu0 0.0
        %828 = vmatprep.subr.mxu0 0.0
        %829 = vmatpush1.msra.mxu0 0.0
        %830 = vmatprep.subr.mxu0 0.0
        %831 = vmatpush1.msra.mxu0 0.0
        %832 = vmatprep.subr.mxu0 0.0
        %833 = vmatpush1.msra.mxu0 0.0
        %834 = vmatprep.subr.mxu0 0.0
        %835 = vmatpush1.msra.mxu0 0.0
        %836 = vmatprep.subr.mxu0 0.0
        %837 = vmatpush1.msra.mxu0 0.0
        %838 = vmatprep.subr.mxu0 0.0
        %839 = vmatpush1.msra.mxu0 0.0
        %840 = vmatprep.subr.mxu0 0.0
        %841 = vmatpush1.msra.mxu0 0.0
        %842 = vmatprep.subr.mxu0 0.0
        %843 = vmatpush1.msra.mxu0 0.0
        %844 = vmatprep.subr.mxu0 0.0
        %845 = vmatpush1.msra.mxu0 0.0
        %846 = vmatprep.subr.mxu0 0.0
        %847 = vmatpush1.msra.mxu0 0.0
        %848 = vmatprep.subr.mxu0 0.0
        %849 = vmatpush1.msra.mxu0 0.0
        %850 = vmatprep.subr.mxu0 0.0
        %851 = vmatpush1.msra.mxu0 0.0
        %852 = vmatprep.subr.mxu0 0.0
        %853 = vmatpush1.msra.mxu0 0.0
        %854 = vmatprep.subr.mxu0 0.0
        %855 = vmatpush1.msra.mxu0 0.0
        %856 = vmatprep.subr.mxu0 0.0
        %857 = vmatpush1.msra.mxu0 0.0
        %858 = vmatprep.subr.mxu0 0.0
        %859 = vmatpush1.msra.mxu0 0.0
        %860 = vmatprep.subr.mxu0 0.0
        %861 = vmatpush1.msra.mxu0 0.0
        %862 = vmatprep.subr.mxu0 0.0
        %863 = vmatpush1.msra.mxu0 0.0
        %864 = vmatprep.subr.mxu0 0.0
        %865 = vmatpush1.msra.mxu0 0.0
        %866 = vmatprep.subr.mxu0 0.0
        %867 = vmatpush1.msra.mxu0 0.0
        %868 = vmatprep.subr.mxu0 0.0
        %869 = vmatpush1.msra.mxu0 0.0
        %870 = vmatprep.subr.mxu0 0.0
        %871 = vmatpush1.msra.mxu0 0.0
        %872 = vmatprep.subr.mxu0 0.0
        %873 = vmatpush1.msra.mxu0 0.0
        %874 = vmatprep.subr.mxu0 0.0
        %875 = vmatpush1.msra.mxu0 0.0
        %876 = vmatprep.subr.mxu0 0.0
        %877 = vmatpush1.msra.mxu0 0.0
        %878 = vmatprep.subr.mxu0 0.0
        %879 = vmatpush1.msra.mxu0 0.0
        %880 = vmatprep.subr.mxu0 0.0
        %881 = vmatpush1.msra.mxu0 0.0
        %882 = vmatprep.subr.mxu0 0.0
        %883 = vmatpush1.msra.mxu0 0.0
        %884 = vmatprep.mubr.f32.mxu0 0.0
        %885 = vmatmul.mubr.f32.gmra.mrb[0].mxu0 %v626
        %v886 = vpop.f32.mrb[0].mxu0
        %v887 = vadd.f32 0.0, %v886
        %v888 = vpop.f32.mrb[0].mxu0
        %889 = vdwg.mxu0
        %v891 = vsel %vm514, %v817, 0
        %893 = vmatprep.subr.mxu0 0.0
        %894 = vmatpush1.msra.mxu0 %v891
        %895 = vmatprep.subr.mxu0 0.0
        %896 = vmatpush1.msra.mxu0 0.0
        %897 = vmatprep.subr.mxu0 0.0
        %898 = vmatpush1.msra.mxu0 0.0
        %899 = vmatprep.subr.mxu0 0.0
        %900 = vmatpush1.msra.mxu0 0.0
        %901 = vmatprep.subr.mxu0 0.0
        %902 = vmatpush1.msra.mxu0 0.0
        %903 = vmatprep.subr.mxu0 0.0
        %904 = vmatpush1.msra.mxu0 0.0
        %905 = vmatprep.subr.mxu0 0.0
        %906 = vmatpush1.msra.mxu0 0.0
        %907 = vmatprep.subr.mxu0 0.0
        %908 = vmatpush1.msra.mxu0 0.0
        %909 = vmatprep.subr.mxu0 0.0
        %910 = vmatpush1.msra.mxu0 0.0
        %911 = vmatprep.subr.mxu0 0.0
        %912 = vmatpush1.msra.mxu0 0.0
        %913 = vmatprep.subr.mxu0 0.0
        %914 = vmatpush1.msra.mxu0 0.0
        %915 = vmatprep.subr.mxu0 0.0
        %916 = vmatpush1.msra.mxu0 0.0
        %917 = vmatprep.subr.mxu0 0.0
        %918 = vmatpush1.msra.mxu0 0.0
        %919 = vmatprep.subr.mxu0 0.0
        %920 = vmatpush1.msra.mxu0 0.0
        %921 = vmatprep.subr.mxu0 0.0
        %922 = vmatpush1.msra.mxu0 0.0
        %923 = vmatprep.subr.mxu0 0.0
        %924 = vmatpush1.msra.mxu0 0.0
        %925 = vmatprep.subr.mxu0 0.0
        %926 = vmatpush1.msra.mxu0 0.0
        %927 = vmatprep.subr.mxu0 0.0
        %928 = vmatpush1.msra.mxu0 0.0
        %929 = vmatprep.subr.mxu0 0.0
        %930 = vmatpush1.msra.mxu0 0.0
        %931 = vmatprep.subr.mxu0 0.0
        %932 = vmatpush1.msra.mxu0 0.0
        %933 = vmatprep.subr.mxu0 0.0
        %934 = vmatpush1.msra.mxu0 0.0
        %935 = vmatprep.subr.mxu0 0.0
        %936 = vmatpush1.msra.mxu0 0.0
        %937 = vmatprep.subr.mxu0 0.0
        %938 = vmatpush1.msra.mxu0 0.0
        %939 = vmatprep.subr.mxu0 0.0
        %940 = vmatpush1.msra.mxu0 0.0
        %941 = vmatprep.subr.mxu0 0.0
        %942 = vmatpush1.msra.mxu0 0.0
        %943 = vmatprep.subr.mxu0 0.0
        %944 = vmatpush1.msra.mxu0 0.0
        %945 = vmatprep.subr.mxu0 0.0
        %946 = vmatpush1.msra.mxu0 0.0
        %947 = vmatprep.subr.mxu0 0.0
        %948 = vmatpush1.msra.mxu0 0.0
        %949 = vmatprep.subr.mxu0 0.0
        %950 = vmatpush1.msra.mxu0 0.0
        %951 = vmatprep.subr.mxu0 0.0
        %952 = vmatpush1.msra.mxu0 0.0
        %953 = vmatprep.subr.mxu0 0.0
        %954 = vmatpush1.msra.mxu0 0.0
        %955 = vmatprep.subr.mxu0 0.0
        %956 = vmatpush1.msra.mxu0 0.0
        %957 = vmatprep.mubr.f32.mxu0 0.0
        %958 = vmatmul.mubr.f32.gmra.mrb[0].mxu0 %v512
        %v959 = vpop.f32.mrb[0].mxu0
        %v960 = vadd.f32 %v887, %v959
        %v961 = vpop.f32.mrb[0].mxu0
        %962 = vdwg.mxu0
        %v963 = vld [vmem:[%s8] sm:$0x1]
        %v965 = vlaneseq
        %v966 = vshrl.u32 %v965, 7
        %v967 = vsub.s32 0, %v966
        %v968 = vrot.slane %v963, %v967
        %v970 = vadd.f32 %v960, %v968
        %v971 = vmax.f32 %v970, 0.0
        %v972 = vld [vmem:[%s9] sm:$0x1]
        %v974 = vlaneseq
        %v975 = vshrl.u32 %v974, 7
        %v976 = vsub.s32 0, %v975
        %v977 = vrot.slane %v972, %v976
        %v979 = vmul.f32 %v971, %v977
        %vm980 = vcmask 39936
        %v981 = vsel %vm980, %v979, 0.0
        %982 = vadd.xlane.f32.xlu0 %v981
        %v983 = vpop.xlane.xlu0 %982
        %v984 = vrot.slane %v983, 4
        %v985 = vadd.f32 %v983, %v984
        %v986 = vrot.slane %v985, 2
        %v987 = vadd.f32 %v985, %v986
        %v988 = vrot.slane %v987, 1
        %v989 = vadd.f32 %v987, %v988
        %s990 = vtos %v989
        %v991 = vmul.f32 %v603, %v603
        %v992 = vmul.f32 %v585, %v585
        %994 = vrot.lane.b32.xlu0 %v991, 112
        %v995 = vpop.permute.xlu0 %994
        %v997 = vadd.f32 %v992, %v995
        %v998 = vlog2.pop %v991
        %v999 = vmul.f32 %v998, 0.6931472
        %1001 = vrot.lane.b32.xlu0 %v999, 112
        %v1002 = vpop.permute.xlu0 %1001
        %v1004 = vsub.f32 %v997, %v1002
        %v1005 = vsub.f32 %v1004, 1.0
        %v1006 = vsel %vm624, %v1005, 0.0
        %1007 = vadd.xlane.f32.xlu0 %v1006
        %v1008 = vpop.xlane.xlu0 %1007
        %v1009 = vrot.slane %v1008, 4
        %v1010 = vadd.f32 %v1008, %v1009
        %v1011 = vrot.slane %v1010, 2
        %v1012 = vadd.f32 %v1010, %v1011
        %v1013 = vrot.slane %v1012, 1
        %v1014 = vadd.f32 %v1012, %v1013
        %s1015 = vtos %v1014
        %v1016 = vlaneseq
        %v1017 = vand.u32 %v1016, 127
        %v1018 = vlaneseq
        %v1019 = vshrl.u32 %v1018, 7
        %vm1020 = vcmp.eq.s32.totalorder %v1019, 0
        %vm1021 = vcmp.eq.s32.totalorder %v1017, 0
        %vm1022 = vmand %vm1020, %vm1021
        %v1023 = vstv %s1015
        %v1024 = vsel %vm1022, %v1023, 0.0
        %v1025 = vadd.f32 %v1024, 0.0
        %vm1026 = vcmp.eq.s32.totalorder %v1017, 1
        %vm1027 = vmand %vm1020, %vm1026
        %v1028 = vstv %s990
        %v1029 = vsel %vm1027, %v1028, 0.0
        %v1030 = vadd.f32 %v1025, %v1029
        %1031 = vst [vmem:[%s484] sm:$0xff] %v1030
        %p1032 = scmp.lt.s32.totalorder %s29, 1
        %s1033 = scalar_select %p1032, %s29, 1
        %s1034 = smul.addr %s1033, 8
        %s1035 = scalar_lea.vmem %s12, %s1034
        %p1036 = scmp.lt.s32.totalorder %s29, 1
        %s1037 = scalar_select %p1036, %s29, 1
        %s1038 = smul.addr %s1037, 8
        %s1039 = scalar_lea.vmem %s13, %s1038
        %s1040 = sand.u32 %s351, 1
        %s1041 = scalar_lea.sflag [#allocation3], %s1040
        %s1042 = sand.u32 %s351, 1
        %s1043 = smul.addr %s1042, 8
        %s1044 = scalar_lea.vmem [#allocation2], %s1043
        // Predicated region
        $region69: #{tpu_custom_call.1} parent=67 // pred_check
          %p1045 = pneg %p309
        $region70: #{tpu_custom_call.1} parent=67 // pred_check_branch
          %1047 = sbr.rel (%p1045) target = $region72
        $region71: #{tpu_custom_call.1} parent=67 // pred_region
          _
        $region72: #{tpu_custom_call.1} parent=67 // pred_fallthru
          _
        // Predicated region
        $region73: #{tpu_custom_call.1} parent=67 // pred_check
          %p1048 = pneg %p335
        $region74: #{tpu_custom_call.1} parent=67 // pred_check_branch
          %1050 = sbr.rel (%p1048) target = $region76
        $region75: #{tpu_custom_call.1} parent=67 // pred_region
          _
        $region76: #{tpu_custom_call.1} parent=67 // pred_fallthru
          _
        // Predicated region
        $region77: #{tpu_custom_call.1} parent=67 // pred_check
          %p1051 = pneg %p361
        $region78: #{tpu_custom_call.1} parent=67 // pred_check_branch
          %1053 = sbr.rel (%p1051) target = $region80
        $region79: #{tpu_custom_call.1} parent=67 // pred_region
          %s1055 = ssub.s32 128, 128
          %1056 = vsyncadd %s1041, %s1055
          %s1057 = smul.addr %s29, 128
          %s1058 = scalar_lea.hbm %s14, %s1057
          %s1060 = sshll.u32 %s1044, 4
          %s1061 = int_to_ptr.vmem [resolvable:$true] %s1060
          %1063 = dma.vmem_to_hbm [thread:$0]  %s1061, 128, %s1058, %s1041
        $region80: #{tpu_custom_call.1} parent=67 // pred_fallthru
          _
      $region68: #{tpu_custom_call.1} parent=5 // pred_fallthru
        _
      %p1064 = scmp.le.s32.totalorder 2, %s24
      // Predicated region
      $region81: #{tpu_custom_call.1} parent=5 // pred_check
        %p1065 = pneg %p1064
      $region82: #{tpu_custom_call.1} parent=5 // pred_check_branch
        %1067 = sbr.rel (%p1065) target = $region84
      $region83: #{tpu_custom_call.1} parent=5 // pred_region
        %s1068 = ssub.s32 %s24, 2
        // Predicated region
        $region85: #{tpu_custom_call.1} parent=83 // pred_check
          %p1069 = pneg %p315
        $region86: #{tpu_custom_call.1} parent=83 // pred_check_branch
          %1071 = sbr.rel (%p1069) target = $region88
        $region87: #{tpu_custom_call.1} parent=83 // pred_region
          %p1072 = scmp.lt.s32.totalorder %s30, 1
          %s1073 = scalar_select %p1072, %s30, 1
          %s1074 = smul.addr %s1073, 8
          %s1075 = scalar_lea.vmem %s12, %s1074
        $region88: #{tpu_custom_call.1} parent=83 // pred_fallthru
          _
        // Predicated region
        $region89: #{tpu_custom_call.1} parent=83 // pred_check
          %p1076 = pneg %p341
        $region90: #{tpu_custom_call.1} parent=83 // pred_check_branch
          %1078 = sbr.rel (%p1076) target = $region92
        $region91: #{tpu_custom_call.1} parent=83 // pred_region
          %p1079 = scmp.lt.s32.totalorder %s30, 1
          %s1080 = scalar_select %p1079, %s30, 1
          %s1081 = smul.addr %s1080, 8
          %s1082 = scalar_lea.vmem %s13, %s1081
        $region92: #{tpu_custom_call.1} parent=83 // pred_fallthru
          _
        // Predicated region
        $region93: #{tpu_custom_call.1} parent=83 // pred_check
          %p1083 = pneg %p367
        $region94: #{tpu_custom_call.1} parent=83 // pred_check_branch
          %1085 = sbr.rel (%p1083) target = $region96
        $region95: #{tpu_custom_call.1} parent=83 // pred_region
          %s1086 = sand.u32 %s352, 1
          %s1087 = scalar_lea.sflag [#allocation3], %s1086
          %s1088 = sand.u32 %s352, 1
          %s1089 = smul.addr %s1088, 8
          %s1090 = scalar_lea.vmem [#allocation2], %s1089
          %1091 = dma.done %s1087, 128
        $region96: #{tpu_custom_call.1} parent=83 // pred_fallthru
          _
      $region84: #{tpu_custom_call.1} parent=5 // pred_fallthru
        _
    $region6: #{tpu_custom_call.1} parent=1 // loop_footer
      %s28 = sadd.s32 1, %s24
    $region7: #{tpu_custom_call.1} parent=1 // loop_footer_branch
      %23 = sbr.rel target = $region3
    $region8: #{tpu_custom_call.1} parent=1 // loop_exit
      _
    %1092 = vsyncpa [#allocation3], 1
    %s1093 = scalar_lea.sflag [#allocation3], 1
    %1094 = vsyncpa %s1093, 1

</llo_original>
